<compile_context>
chip_gen: v5e
topology: v5e:2x2
jax: 0.10.0
libtpu: 0.0.40
codegen_flags: <defaults>
</compile_context>

<pallas_src>
import jax
import jax.numpy as jnp
from jax import lax
from jax.experimental import pallas as pl
from jax.experimental.pallas import tpu as pltpu


NF = 2            # num_filter
K = 2             # conv kernel size == stride
H = W = 84        # forced by Linear(882, 6): 84 -> 42 -> 21, 2*21*21 = 882
OH2 = OW2 = 21    # conv2 output spatial size
NACT = 6          # number of actions


# ----------------------------------------------------------------------------
# Fused kernel: conv1+relu -> conv2+relu -> Linear(882,6) -> softmax
# ----------------------------------------------------------------------------
def policy_kernel(w1_ref, b1_ref, w2_ref, b2_ref, bfc_ref, xs_ref, wfcr_ref,
                  out_ref):
    """All-VPU fused forward pass.

    SMEM scalars:
      w1_ref  (8,)  : w1[c, 0, kh1, kw1]   flattened, index c*4 + kh1*2 + kw1
      b1_ref  (2,)
      w2_ref  (16,) : w2[oc, ic, kh2, kw2] flattened, index oc*8 + ic*4 + kh2*2 + kw2
      b2_ref  (2,)
      bfc_ref (6,)
    VMEM:
      xs_ref   [4, 4, 21, 21] : xs[p2, p1, oh, ow] =
                                x[4*oh + 2*(p2//2) + p1//2, 4*ow + 2*(p2%2) + p1%2]
      wfcr_ref [2, 6, 21, 21] : wfcr[c, j, oh, ow] = W_fc[j, c*441 + oh*21 + ow]
      out_ref  [1, 6]         : softmax action probabilities
    """
    kk = K * K

    # conv1 (VPU), computed per (channel, conv2-kernel-position) plane so conv2
    # needs no strided / cross-lane re-layout of the conv1 output.
    # y1[c][p2][oh, ow] == relu(conv1(x))[c, 2*oh + p2//2, 2*ow + p2%2]
    y1 = [[None] * kk for _ in range(NF)]
    for c in range(NF):
        b1c = b1_ref[c]
        for p2 in range(kk):
            acc = xs_ref[p2, 0] * w1_ref[c * 4 + 0]
            for p1 in range(1, kk):
                acc = acc + xs_ref[p2, p1] * w1_ref[c * 4 + p1]
            y1[c][p2] = jnp.maximum(acc + b1c, 0.0)            # [21, 21]

    # conv2 (VPU): weighted sum of the conv2-aligned conv1 planes.
    y2 = []
    for oc in range(NF):
        acc = None
        for ic in range(NF):
            for p2 in range(kk):
                t = y1[ic][p2] * w2_ref[oc * 8 + ic * 4 + p2]
                acc = t if acc is None else acc + t
        y2.append(jnp.maximum(acc + b2_ref[oc], 0.0))          # [21, 21]

    # Linear(882 -> 6): per-action plane contraction, results scattered into a
    # lane-dense [1, 6] row via an iota mask (pure VPU, no concat/relayout).
    lane = lax.broadcasted_iota(jnp.int32, (1, NACT), 1)
    logits = jnp.zeros((1, NACT), jnp.float32)
    for j in range(NACT):
        contrib = y2[0] * wfcr_ref[0, j] + y2[1] * wfcr_ref[1, j]      # [21, 21]
        s = jnp.sum(contrib, axis=(0, 1), keepdims=True) + bfc_ref[j]  # [1, 1]
        logits = logits + jnp.where(lane == j, s, 0.0)

    # softmax (max-subtracted); reciprocal goes to the EUP slot.
    m = jnp.max(logits, axis=1, keepdims=True)
    e = jnp.exp(logits - m)
    inv = pl.reciprocal(jnp.sum(e, axis=1, keepdims=True), approx=True)
    out_ref[...] = e * inv


_policy_call = pl.pallas_call(
    policy_kernel,
    out_shape=jax.ShapeDtypeStruct((1, NACT), jnp.float32),
    in_specs=[
        pl.BlockSpec(memory_space=pltpu.MemorySpace.SMEM),   # w1 scalars
        pl.BlockSpec(memory_space=pltpu.MemorySpace.SMEM),   # b1 scalars
        pl.BlockSpec(memory_space=pltpu.MemorySpace.SMEM),   # w2 scalars
        pl.BlockSpec(memory_space=pltpu.MemorySpace.SMEM),   # b2 scalars
        pl.BlockSpec(memory_space=pltpu.MemorySpace.SMEM),   # bfc scalars
        pl.BlockSpec(memory_space=pltpu.MemorySpace.VMEM),   # xs planes
        pl.BlockSpec(memory_space=pltpu.MemorySpace.VMEM),   # wfcr planes
    ],
    out_specs=pl.BlockSpec(memory_space=pltpu.MemorySpace.VMEM),
)


# ----------------------------------------------------------------------------
# One-time parameter re-layout (model-load time, not per forward call)
# ----------------------------------------------------------------------------
def prepare_params(params):
    w1 = jnp.asarray(params["w1"], jnp.float32)    # [2, 1, 2, 2]
    b1 = jnp.asarray(params["b1"], jnp.float32)    # [2]
    w2 = jnp.asarray(params["w2"], jnp.float32)    # [2, 2, 2, 2]
    b2 = jnp.asarray(params["b2"], jnp.float32)    # [2]
    wfc = jnp.asarray(params["wfc"], jnp.float32)  # [6, 882]
    bfc = jnp.asarray(params["bfc"], jnp.float32)  # [6]
    # wfcr[c, j, oh, ow] = wfc[j, c*441 + oh*21 + ow]  (PyTorch CHW flatten order)
    wfcr = wfc.reshape(NACT, NF, OH2, OW2).transpose(1, 0, 2, 3)
    return {
        "w1_s": w1.reshape(-1),     # (8,)
        "b1_s": b1.reshape(-1),     # (2,)
        "w2_s": w2.reshape(-1),     # (16,)
        "b2_s": b2.reshape(-1),     # (2,)
        "bfc_s": bfc.reshape(-1),   # (6,)
        "wfcr": wfcr,               # [2, 6, 21, 21]
    }


# ----------------------------------------------------------------------------
# Jitted forward pass (single dispatch: one transpose + one fused pallas_call)
# ----------------------------------------------------------------------------
@jax.jit
def policy_forward(x, kparams):
    """x: [1, 1, 84, 84] float32 (NCHW). Returns softmax action probs [1, 6]."""
    x2 = x.reshape(H, W)
    # Two-level space-to-depth: xs[p2, p1, oh, ow] =
    #   x[4*oh + 2*(p2//2) + p1//2, 4*ow + 2*(p2%2) + p1%2]
    xs = (x2.reshape(OH2, K, K, OW2, K, K)      # (oh, kh2, kh1, ow, kw2, kw1)
            .transpose(1, 4, 2, 5, 0, 3)        # (kh2, kw2, kh1, kw1, oh, ow)
            .reshape(K * K, K * K, OH2, OW2))   # (p2, p1, oh, ow)
    return _policy_call(kparams["w1_s"], kparams["b1_s"], kparams["w2_s"],
                        kparams["b2_s"], kparams["bfc_s"], xs, kparams["wfcr"])


# ----------------------------------------------------------------------------
# Pure-JAX reference (real convs) for the semantics check
# ----------------------------------------------------------------------------
def policy_forward_ref(x, params):
    w1, b1, w2, b2, wfc, bfc = (params[k] for k in ("w1", "b1", "w2", "b2", "wfc", "bfc"))
    dn = ("NCHW", "OIHW", "NCHW")
    y = lax.conv_general_dilated(x, w1, (2, 2), "VALID", dimension_numbers=dn)
    y = jnp.maximum(y + b1[None, :, None, None], 0.0)
    y = lax.conv_general_dilated(y, w2, (2, 2), "VALID", dimension_numbers=dn)
    y = jnp.maximum(y + b2[None, :, None, None], 0.0)
    logits = y.reshape(1, -1) @ wfc.T + bfc[None, :]
    return jax.nn.softmax(logits, axis=1)


if __name__ == "__main__":
    key = jax.random.PRNGKey(0)
    kx, k1, k2, k3, k4, k5, k6 = jax.random.split(key, 7)

    # deterministic synthetic parameters (shapes from Policy.__init__ defaults)
    params = {
        "w1": 0.1 * jax.random.normal(k1, (2, 1, 2, 2), jnp.float32),   # conv1 [OC,IC,kH,kW]
        "b1": 0.01 * jax.random.normal(k2, (2,), jnp.float32),
        "w2": 0.1 * jax.random.normal(k3, (2, 2, 2, 2), jnp.float32),   # conv2
        "b2": 0.01 * jax.random.normal(k4, (2,), jnp.float32),
        "wfc": 0.1 * jax.random.normal(k5, (6, 882), jnp.float32),      # affine2
        "bfc": 0.01 * jax.random.normal(k6, (6,), jnp.float32),
    }
    kparams = prepare_params(params)   # one-time, kernel-ready layouts

    # input: NCHW [1, 1, 84, 84]  (84x84 / batch=1 forced by Linear(882, 6))
    x = jax.random.normal(kx, (1, 1, 84, 84), jnp.float32)

    probs = policy_forward(x, kparams)
    probs = jax.block_until_ready(probs)

    ref = policy_forward_ref(x, params)
    assert probs.shape == (1, 6)
    # approx=True reciprocal in the softmax => slightly looser tolerances
    assert jnp.allclose(jnp.sum(probs), 1.0, atol=2e-3)
    assert jnp.allclose(probs, ref, atol=2e-3, rtol=2e-3), (probs, ref)

    print("KERNEL_OK")
</pallas_src>

<mosaic_0001>
module attributes {stable_mosaic.version = 11 : i64} {
  func.func @policy_kernel(%arg0: memref<8xf32, #tpu.memory_space<smem>>, %arg1: memref<2xf32, #tpu.memory_space<smem>>, %arg2: memref<16xf32, #tpu.memory_space<smem>>, %arg3: memref<2xf32, #tpu.memory_space<smem>>, %arg4: memref<6xf32, #tpu.memory_space<smem>>, %arg5: memref<4x4x21x21xf32, #tpu.memory_space<vmem>>, %arg6: memref<2x6x21x21xf32, #tpu.memory_space<vmem>>, %arg7: memref<1x6xf32, #tpu.memory_space<vmem>>) attributes {dimension_semantics = [], scalar_prefetch = 0 : i64, scratch_operands = 0 : i64, tpu.core_type = #tpu.core_type<tc>} {
    %c0 = arith.constant 0 : index
    %0 = memref.load %arg1[%c0] : memref<2xf32, #tpu.memory_space<smem>>
    %c0_0 = arith.constant 0 : index
    %c0_1 = arith.constant 0 : index
    %c0_2 = arith.constant 0 : index
    %c0_3 = arith.constant 0 : index
    %1 = vector.load %arg5[%c0_0, %c0_1, %c0_2, %c0_3] : memref<4x4x21x21xf32, #tpu.memory_space<vmem>>, vector<1x1x21x21xf32>
    %2 = vector.shape_cast %1 : vector<1x1x21x21xf32> to vector<21x21xf32>
    %c0_4 = arith.constant 0 : index
    %3 = memref.load %arg0[%c0_4] : memref<8xf32, #tpu.memory_space<smem>>
    %4 = vector.broadcast %3 : f32 to vector<21x21xf32>
    %5 = arith.mulf %2, %4 : vector<21x21xf32>
    %c0_5 = arith.constant 0 : index
    %c1 = arith.constant 1 : index
    %c0_6 = arith.constant 0 : index
    %c0_7 = arith.constant 0 : index
    %6 = vector.load %arg5[%c0_5, %c1, %c0_6, %c0_7] : memref<4x4x21x21xf32, #tpu.memory_space<vmem>>, vector<1x1x21x21xf32>
    %7 = vector.shape_cast %6 : vector<1x1x21x21xf32> to vector<21x21xf32>
    %c1_8 = arith.constant 1 : index
    %8 = memref.load %arg0[%c1_8] : memref<8xf32, #tpu.memory_space<smem>>
    %9 = vector.broadcast %8 : f32 to vector<21x21xf32>
    %10 = arith.mulf %7, %9 : vector<21x21xf32>
    %11 = arith.addf %5, %10 : vector<21x21xf32>
    %c0_9 = arith.constant 0 : index
    %c2 = arith.constant 2 : index
    %c0_10 = arith.constant 0 : index
    %c0_11 = arith.constant 0 : index
    %12 = vector.load %arg5[%c0_9, %c2, %c0_10, %c0_11] : memref<4x4x21x21xf32, #tpu.memory_space<vmem>>, vector<1x1x21x21xf32>
    %13 = vector.shape_cast %12 : vector<1x1x21x21xf32> to vector<21x21xf32>
    %c2_12 = arith.constant 2 : index
    %14 = memref.load %arg0[%c2_12] : memref<8xf32, #tpu.memory_space<smem>>
    %15 = vector.broadcast %14 : f32 to vector<21x21xf32>
    %16 = arith.mulf %13, %15 : vector<21x21xf32>
    %17 = arith.addf %11, %16 : vector<21x21xf32>
    %c0_13 = arith.constant 0 : index
    %c3 = arith.constant 3 : index
    %c0_14 = arith.constant 0 : index
    %c0_15 = arith.constant 0 : index
    %18 = vector.load %arg5[%c0_13, %c3, %c0_14, %c0_15] : memref<4x4x21x21xf32, #tpu.memory_space<vmem>>, vector<1x1x21x21xf32>
    %19 = vector.shape_cast %18 : vector<1x1x21x21xf32> to vector<21x21xf32>
    %c3_16 = arith.constant 3 : index
    %20 = memref.load %arg0[%c3_16] : memref<8xf32, #tpu.memory_space<smem>>
    %21 = vector.broadcast %20 : f32 to vector<21x21xf32>
    %22 = arith.mulf %19, %21 : vector<21x21xf32>
    %23 = arith.addf %17, %22 : vector<21x21xf32>
    %24 = vector.broadcast %0 : f32 to vector<21x21xf32>
    %25 = arith.addf %23, %24 : vector<21x21xf32>
    %cst = arith.constant 0.000000e+00 : f32
    %26 = vector.broadcast %cst : f32 to vector<21x21xf32>
    %27 = arith.maximumf %25, %26 : vector<21x21xf32>
    %c1_17 = arith.constant 1 : index
    %c0_18 = arith.constant 0 : index
    %c0_19 = arith.constant 0 : index
    %c0_20 = arith.constant 0 : index
    %28 = vector.load %arg5[%c1_17, %c0_18, %c0_19, %c0_20] : memref<4x4x21x21xf32, #tpu.memory_space<vmem>>, vector<1x1x21x21xf32>
    %29 = vector.shape_cast %28 : vector<1x1x21x21xf32> to vector<21x21xf32>
    %c0_21 = arith.constant 0 : index
    %30 = memref.load %arg0[%c0_21] : memref<8xf32, #tpu.memory_space<smem>>
    %31 = vector.broadcast %30 : f32 to vector<21x21xf32>
    %32 = arith.mulf %29, %31 : vector<21x21xf32>
    %c1_22 = arith.constant 1 : index
    %c1_23 = arith.constant 1 : index
    %c0_24 = arith.constant 0 : index
    %c0_25 = arith.constant 0 : index
    %33 = vector.load %arg5[%c1_22, %c1_23, %c0_24, %c0_25] : memref<4x4x21x21xf32, #tpu.memory_space<vmem>>, vector<1x1x21x21xf32>
    %34 = vector.shape_cast %33 : vector<1x1x21x21xf32> to vector<21x21xf32>
    %c1_26 = arith.constant 1 : index
    %35 = memref.load %arg0[%c1_26] : memref<8xf32, #tpu.memory_space<smem>>
    %36 = vector.broadcast %35 : f32 to vector<21x21xf32>
    %37 = arith.mulf %34, %36 : vector<21x21xf32>
    %38 = arith.addf %32, %37 : vector<21x21xf32>
    %c1_27 = arith.constant 1 : index
    %c2_28 = arith.constant 2 : index
    %c0_29 = arith.constant 0 : index
    %c0_30 = arith.constant 0 : index
    %39 = vector.load %arg5[%c1_27, %c2_28, %c0_29, %c0_30] : memref<4x4x21x21xf32, #tpu.memory_space<vmem>>, vector<1x1x21x21xf32>
    %40 = vector.shape_cast %39 : vector<1x1x21x21xf32> to vector<21x21xf32>
    %c2_31 = arith.constant 2 : index
    %41 = memref.load %arg0[%c2_31] : memref<8xf32, #tpu.memory_space<smem>>
    %42 = vector.broadcast %41 : f32 to vector<21x21xf32>
    %43 = arith.mulf %40, %42 : vector<21x21xf32>
    %44 = arith.addf %38, %43 : vector<21x21xf32>
    %c1_32 = arith.constant 1 : index
    %c3_33 = arith.constant 3 : index
    %c0_34 = arith.constant 0 : index
    %c0_35 = arith.constant 0 : index
    %45 = vector.load %arg5[%c1_32, %c3_33, %c0_34, %c0_35] : memref<4x4x21x21xf32, #tpu.memory_space<vmem>>, vector<1x1x21x21xf32>
    %46 = vector.shape_cast %45 : vector<1x1x21x21xf32> to vector<21x21xf32>
    %c3_36 = arith.constant 3 : index
    %47 = memref.load %arg0[%c3_36] : memref<8xf32, #tpu.memory_space<smem>>
    %48 = vector.broadcast %47 : f32 to vector<21x21xf32>
    %49 = arith.mulf %46, %48 : vector<21x21xf32>
    %50 = arith.addf %44, %49 : vector<21x21xf32>
    %51 = vector.broadcast %0 : f32 to vector<21x21xf32>
    %52 = arith.addf %50, %51 : vector<21x21xf32>
    %cst_37 = arith.constant 0.000000e+00 : f32
    %53 = vector.broadcast %cst_37 : f32 to vector<21x21xf32>
    %54 = arith.maximumf %52, %53 : vector<21x21xf32>
    %c2_38 = arith.constant 2 : index
    %c0_39 = arith.constant 0 : index
    %c0_40 = arith.constant 0 : index
    %c0_41 = arith.constant 0 : index
    %55 = vector.load %arg5[%c2_38, %c0_39, %c0_40, %c0_41] : memref<4x4x21x21xf32, #tpu.memory_space<vmem>>, vector<1x1x21x21xf32>
    %56 = vector.shape_cast %55 : vector<1x1x21x21xf32> to vector<21x21xf32>
    %c0_42 = arith.constant 0 : index
    %57 = memref.load %arg0[%c0_42] : memref<8xf32, #tpu.memory_space<smem>>
    %58 = vector.broadcast %57 : f32 to vector<21x21xf32>
    %59 = arith.mulf %56, %58 : vector<21x21xf32>
    %c2_43 = arith.constant 2 : index
    %c1_44 = arith.constant 1 : index
    %c0_45 = arith.constant 0 : index
    %c0_46 = arith.constant 0 : index
    %60 = vector.load %arg5[%c2_43, %c1_44, %c0_45, %c0_46] : memref<4x4x21x21xf32, #tpu.memory_space<vmem>>, vector<1x1x21x21xf32>
    %61 = vector.shape_cast %60 : vector<1x1x21x21xf32> to vector<21x21xf32>
    %c1_47 = arith.constant 1 : index
    %62 = memref.load %arg0[%c1_47] : memref<8xf32, #tpu.memory_space<smem>>
    %63 = vector.broadcast %62 : f32 to vector<21x21xf32>
    %64 = arith.mulf %61, %63 : vector<21x21xf32>
    %65 = arith.addf %59, %64 : vector<21x21xf32>
    %c2_48 = arith.constant 2 : index
    %c2_49 = arith.constant 2 : index
    %c0_50 = arith.constant 0 : index
    %c0_51 = arith.constant 0 : index
    %66 = vector.load %arg5[%c2_48, %c2_49, %c0_50, %c0_51] : memref<4x4x21x21xf32, #tpu.memory_space<vmem>>, vector<1x1x21x21xf32>
    %67 = vector.shape_cast %66 : vector<1x1x21x21xf32> to vector<21x21xf32>
    %c2_52 = arith.constant 2 : index
    %68 = memref.load %arg0[%c2_52] : memref<8xf32, #tpu.memory_space<smem>>
    %69 = vector.broadcast %68 : f32 to vector<21x21xf32>
    %70 = arith.mulf %67, %69 : vector<21x21xf32>
    %71 = arith.addf %65, %70 : vector<21x21xf32>
    %c2_53 = arith.constant 2 : index
    %c3_54 = arith.constant 3 : index
    %c0_55 = arith.constant 0 : index
    %c0_56 = arith.constant 0 : index
    %72 = vector.load %arg5[%c2_53, %c3_54, %c0_55, %c0_56] : memref<4x4x21x21xf32, #tpu.memory_space<vmem>>, vector<1x1x21x21xf32>
    %73 = vector.shape_cast %72 : vector<1x1x21x21xf32> to vector<21x21xf32>
    %c3_57 = arith.constant 3 : index
    %74 = memref.load %arg0[%c3_57] : memref<8xf32, #tpu.memory_space<smem>>
    %75 = vector.broadcast %74 : f32 to vector<21x21xf32>
    %76 = arith.mulf %73, %75 : vector<21x21xf32>
    %77 = arith.addf %71, %76 : vector<21x21xf32>
    %78 = vector.broadcast %0 : f32 to vector<21x21xf32>
    %79 = arith.addf %77, %78 : vector<21x21xf32>
    %cst_58 = arith.constant 0.000000e+00 : f32
    %80 = vector.broadcast %cst_58 : f32 to vector<21x21xf32>
    %81 = arith.maximumf %79, %80 : vector<21x21xf32>
    %c3_59 = arith.constant 3 : index
    %c0_60 = arith.constant 0 : index
    %c0_61 = arith.constant 0 : index
    %c0_62 = arith.constant 0 : index
    %82 = vector.load %arg5[%c3_59, %c0_60, %c0_61, %c0_62] : memref<4x4x21x21xf32, #tpu.memory_space<vmem>>, vector<1x1x21x21xf32>
    %83 = vector.shape_cast %82 : vector<1x1x21x21xf32> to vector<21x21xf32>
    %c0_63 = arith.constant 0 : index
    %84 = memref.load %arg0[%c0_63] : memref<8xf32, #tpu.memory_space<smem>>
    %85 = vector.broadcast %84 : f32 to vector<21x21xf32>
    %86 = arith.mulf %83, %85 : vector<21x21xf32>
    %c3_64 = arith.constant 3 : index
    %c1_65 = arith.constant 1 : index
    %c0_66 = arith.constant 0 : index
    %c0_67 = arith.constant 0 : index
    %87 = vector.load %arg5[%c3_64, %c1_65, %c0_66, %c0_67] : memref<4x4x21x21xf32, #tpu.memory_space<vmem>>, vector<1x1x21x21xf32>
    %88 = vector.shape_cast %87 : vector<1x1x21x21xf32> to vector<21x21xf32>
    %c1_68 = arith.constant 1 : index
    %89 = memref.load %arg0[%c1_68] : memref<8xf32, #tpu.memory_space<smem>>
    %90 = vector.broadcast %89 : f32 to vector<21x21xf32>
    %91 = arith.mulf %88, %90 : vector<21x21xf32>
    %92 = arith.addf %86, %91 : vector<21x21xf32>
    %c3_69 = arith.constant 3 : index
    %c2_70 = arith.constant 2 : index
    %c0_71 = arith.constant 0 : index
    %c0_72 = arith.constant 0 : index
    %93 = vector.load %arg5[%c3_69, %c2_70, %c0_71, %c0_72] : memref<4x4x21x21xf32, #tpu.memory_space<vmem>>, vector<1x1x21x21xf32>
    %94 = vector.shape_cast %93 : vector<1x1x21x21xf32> to vector<21x21xf32>
    %c2_73 = arith.constant 2 : index
    %95 = memref.load %arg0[%c2_73] : memref<8xf32, #tpu.memory_space<smem>>
    %96 = vector.broadcast %95 : f32 to vector<21x21xf32>
    %97 = arith.mulf %94, %96 : vector<21x21xf32>
    %98 = arith.addf %92, %97 : vector<21x21xf32>
    %c3_74 = arith.constant 3 : index
    %c3_75 = arith.constant 3 : index
    %c0_76 = arith.constant 0 : index
    %c0_77 = arith.constant 0 : index
    %99 = vector.load %arg5[%c3_74, %c3_75, %c0_76, %c0_77] : memref<4x4x21x21xf32, #tpu.memory_space<vmem>>, vector<1x1x21x21xf32>
    %100 = vector.shape_cast %99 : vector<1x1x21x21xf32> to vector<21x21xf32>
    %c3_78 = arith.constant 3 : index
    %101 = memref.load %arg0[%c3_78] : memref<8xf32, #tpu.memory_space<smem>>
    %102 = vector.broadcast %101 : f32 to vector<21x21xf32>
    %103 = arith.mulf %100, %102 : vector<21x21xf32>
    %104 = arith.addf %98, %103 : vector<21x21xf32>
    %105 = vector.broadcast %0 : f32 to vector<21x21xf32>
    %106 = arith.addf %104, %105 : vector<21x21xf32>
    %cst_79 = arith.constant 0.000000e+00 : f32
    %107 = vector.broadcast %cst_79 : f32 to vector<21x21xf32>
    %108 = arith.maximumf %106, %107 : vector<21x21xf32>
    %c1_80 = arith.constant 1 : index
    %109 = memref.load %arg1[%c1_80] : memref<2xf32, #tpu.memory_space<smem>>
    %c0_81 = arith.constant 0 : index
    %c0_82 = arith.constant 0 : index
    %c0_83 = arith.constant 0 : index
    %c0_84 = arith.constant 0 : index
    %110 = vector.load %arg5[%c0_81, %c0_82, %c0_83, %c0_84] : memref<4x4x21x21xf32, #tpu.memory_space<vmem>>, vector<1x1x21x21xf32>
    %111 = vector.shape_cast %110 : vector<1x1x21x21xf32> to vector<21x21xf32>
    %c4 = arith.constant 4 : index
    %112 = memref.load %arg0[%c4] : memref<8xf32, #tpu.memory_space<smem>>
    %113 = vector.broadcast %112 : f32 to vector<21x21xf32>
    %114 = arith.mulf %111, %113 : vector<21x21xf32>
    %c0_85 = arith.constant 0 : index
    %c1_86 = arith.constant 1 : index
    %c0_87 = arith.constant 0 : index
    %c0_88 = arith.constant 0 : index
    %115 = vector.load %arg5[%c0_85, %c1_86, %c0_87, %c0_88] : memref<4x4x21x21xf32, #tpu.memory_space<vmem>>, vector<1x1x21x21xf32>
    %116 = vector.shape_cast %115 : vector<1x1x21x21xf32> to vector<21x21xf32>
    %c5 = arith.constant 5 : index
    %117 = memref.load %arg0[%c5] : memref<8xf32, #tpu.memory_space<smem>>
    %118 = vector.broadcast %117 : f32 to vector<21x21xf32>
    %119 = arith.mulf %116, %118 : vector<21x21xf32>
    %120 = arith.addf %114, %119 : vector<21x21xf32>
    %c0_89 = arith.constant 0 : index
    %c2_90 = arith.constant 2 : index
    %c0_91 = arith.constant 0 : index
    %c0_92 = arith.constant 0 : index
    %121 = vector.load %arg5[%c0_89, %c2_90, %c0_91, %c0_92] : memref<4x4x21x21xf32, #tpu.memory_space<vmem>>, vector<1x1x21x21xf32>
    %122 = vector.shape_cast %121 : vector<1x1x21x21xf32> to vector<21x21xf32>
    %c6 = arith.constant 6 : index
    %123 = memref.load %arg0[%c6] : memref<8xf32, #tpu.memory_space<smem>>
    %124 = vector.broadcast %123 : f32 to vector<21x21xf32>
    %125 = arith.mulf %122, %124 : vector<21x21xf32>
    %126 = arith.addf %120, %125 : vector<21x21xf32>
    %c0_93 = arith.constant 0 : index
    %c3_94 = arith.constant 3 : index
    %c0_95 = arith.constant 0 : index
    %c0_96 = arith.constant 0 : index
    %127 = vector.load %arg5[%c0_93, %c3_94, %c0_95, %c0_96] : memref<4x4x21x21xf32, #tpu.memory_space<vmem>>, vector<1x1x21x21xf32>
    %128 = vector.shape_cast %127 : vector<1x1x21x21xf32> to vector<21x21xf32>
    %c7 = arith.constant 7 : index
    %129 = memref.load %arg0[%c7] : memref<8xf32, #tpu.memory_space<smem>>
    %130 = vector.broadcast %129 : f32 to vector<21x21xf32>
    %131 = arith.mulf %128, %130 : vector<21x21xf32>
    %132 = arith.addf %126, %131 : vector<21x21xf32>
    %133 = vector.broadcast %109 : f32 to vector<21x21xf32>
    %134 = arith.addf %132, %133 : vector<21x21xf32>
    %cst_97 = arith.constant 0.000000e+00 : f32
    %135 = vector.broadcast %cst_97 : f32 to vector<21x21xf32>
    %136 = arith.maximumf %134, %135 : vector<21x21xf32>
    %c1_98 = arith.constant 1 : index
    %c0_99 = arith.constant 0 : index
    %c0_100 = arith.constant 0 : index
    %c0_101 = arith.constant 0 : index
    %137 = vector.load %arg5[%c1_98, %c0_99, %c0_100, %c0_101] : memref<4x4x21x21xf32, #tpu.memory_space<vmem>>, vector<1x1x21x21xf32>
    %138 = vector.shape_cast %137 : vector<1x1x21x21xf32> to vector<21x21xf32>
    %c4_102 = arith.constant 4 : index
    %139 = memref.load %arg0[%c4_102] : memref<8xf32, #tpu.memory_space<smem>>
    %140 = vector.broadcast %139 : f32 to vector<21x21xf32>
    %141 = arith.mulf %138, %140 : vector<21x21xf32>
    %c1_103 = arith.constant 1 : index
    %c1_104 = arith.constant 1 : index
    %c0_105 = arith.constant 0 : index
    %c0_106 = arith.constant 0 : index
    %142 = vector.load %arg5[%c1_103, %c1_104, %c0_105, %c0_106] : memref<4x4x21x21xf32, #tpu.memory_space<vmem>>, vector<1x1x21x21xf32>
    %143 = vector.shape_cast %142 : vector<1x1x21x21xf32> to vector<21x21xf32>
    %c5_107 = arith.constant 5 : index
    %144 = memref.load %arg0[%c5_107] : memref<8xf32, #tpu.memory_space<smem>>
    %145 = vector.broadcast %144 : f32 to vector<21x21xf32>
    %146 = arith.mulf %143, %145 : vector<21x21xf32>
    %147 = arith.addf %141, %146 : vector<21x21xf32>
    %c1_108 = arith.constant 1 : index
    %c2_109 = arith.constant 2 : index
    %c0_110 = arith.constant 0 : index
    %c0_111 = arith.constant 0 : index
    %148 = vector.load %arg5[%c1_108, %c2_109, %c0_110, %c0_111] : memref<4x4x21x21xf32, #tpu.memory_space<vmem>>, vector<1x1x21x21xf32>
    %149 = vector.shape_cast %148 : vector<1x1x21x21xf32> to vector<21x21xf32>
    %c6_112 = arith.constant 6 : index
    %150 = memref.load %arg0[%c6_112] : memref<8xf32, #tpu.memory_space<smem>>
    %151 = vector.broadcast %150 : f32 to vector<21x21xf32>
    %152 = arith.mulf %149, %151 : vector<21x21xf32>
    %153 = arith.addf %147, %152 : vector<21x21xf32>
    %c1_113 = arith.constant 1 : index
    %c3_114 = arith.constant 3 : index
    %c0_115 = arith.constant 0 : index
    %c0_116 = arith.constant 0 : index
    %154 = vector.load %arg5[%c1_113, %c3_114, %c0_115, %c0_116] : memref<4x4x21x21xf32, #tpu.memory_space<vmem>>, vector<1x1x21x21xf32>
    %155 = vector.shape_cast %154 : vector<1x1x21x21xf32> to vector<21x21xf32>
    %c7_117 = arith.constant 7 : index
    %156 = memref.load %arg0[%c7_117] : memref<8xf32, #tpu.memory_space<smem>>
    %157 = vector.broadcast %156 : f32 to vector<21x21xf32>
    %158 = arith.mulf %155, %157 : vector<21x21xf32>
    %159 = arith.addf %153, %158 : vector<21x21xf32>
    %160 = vector.broadcast %109 : f32 to vector<21x21xf32>
    %161 = arith.addf %159, %160 : vector<21x21xf32>
    %cst_118 = arith.constant 0.000000e+00 : f32
    %162 = vector.broadcast %cst_118 : f32 to vector<21x21xf32>
    %163 = arith.maximumf %161, %162 : vector<21x21xf32>
    %c2_119 = arith.constant 2 : index
    %c0_120 = arith.constant 0 : index
    %c0_121 = arith.constant 0 : index
    %c0_122 = arith.constant 0 : index
    %164 = vector.load %arg5[%c2_119, %c0_120, %c0_121, %c0_122] : memref<4x4x21x21xf32, #tpu.memory_space<vmem>>, vector<1x1x21x21xf32>
    %165 = vector.shape_cast %164 : vector<1x1x21x21xf32> to vector<21x21xf32>
    %c4_123 = arith.constant 4 : index
    %166 = memref.load %arg0[%c4_123] : memref<8xf32, #tpu.memory_space<smem>>
    %167 = vector.broadcast %166 : f32 to vector<21x21xf32>
    %168 = arith.mulf %165, %167 : vector<21x21xf32>
    %c2_124 = arith.constant 2 : index
    %c1_125 = arith.constant 1 : index
    %c0_126 = arith.constant 0 : index
    %c0_127 = arith.constant 0 : index
    %169 = vector.load %arg5[%c2_124, %c1_125, %c0_126, %c0_127] : memref<4x4x21x21xf32, #tpu.memory_space<vmem>>, vector<1x1x21x21xf32>
    %170 = vector.shape_cast %169 : vector<1x1x21x21xf32> to vector<21x21xf32>
    %c5_128 = arith.constant 5 : index
    %171 = memref.load %arg0[%c5_128] : memref<8xf32, #tpu.memory_space<smem>>
    %172 = vector.broadcast %171 : f32 to vector<21x21xf32>
    %173 = arith.mulf %170, %172 : vector<21x21xf32>
    %174 = arith.addf %168, %173 : vector<21x21xf32>
    %c2_129 = arith.constant 2 : index
    %c2_130 = arith.constant 2 : index
    %c0_131 = arith.constant 0 : index
    %c0_132 = arith.constant 0 : index
    %175 = vector.load %arg5[%c2_129, %c2_130, %c0_131, %c0_132] : memref<4x4x21x21xf32, #tpu.memory_space<vmem>>, vector<1x1x21x21xf32>
    %176 = vector.shape_cast %175 : vector<1x1x21x21xf32> to vector<21x21xf32>
    %c6_133 = arith.constant 6 : index
    %177 = memref.load %arg0[%c6_133] : memref<8xf32, #tpu.memory_space<smem>>
    %178 = vector.broadcast %177 : f32 to vector<21x21xf32>
    %179 = arith.mulf %176, %178 : vector<21x21xf32>
    %180 = arith.addf %174, %179 : vector<21x21xf32>
    %c2_134 = arith.constant 2 : index
    %c3_135 = arith.constant 3 : index
    %c0_136 = arith.constant 0 : index
    %c0_137 = arith.constant 0 : index
    %181 = vector.load %arg5[%c2_134, %c3_135, %c0_136, %c0_137] : memref<4x4x21x21xf32, #tpu.memory_space<vmem>>, vector<1x1x21x21xf32>
    %182 = vector.shape_cast %181 : vector<1x1x21x21xf32> to vector<21x21xf32>
    %c7_138 = arith.constant 7 : index
    %183 = memref.load %arg0[%c7_138] : memref<8xf32, #tpu.memory_space<smem>>
    %184 = vector.broadcast %183 : f32 to vector<21x21xf32>
    %185 = arith.mulf %182, %184 : vector<21x21xf32>
    %186 = arith.addf %180, %185 : vector<21x21xf32>
    %187 = vector.broadcast %109 : f32 to vector<21x21xf32>
    %188 = arith.addf %186, %187 : vector<21x21xf32>
    %cst_139 = arith.constant 0.000000e+00 : f32
    %189 = vector.broadcast %cst_139 : f32 to vector<21x21xf32>
    %190 = arith.maximumf %188, %189 : vector<21x21xf32>
    %c3_140 = arith.constant 3 : index
    %c0_141 = arith.constant 0 : index
    %c0_142 = arith.constant 0 : index
    %c0_143 = arith.constant 0 : index
    %191 = vector.load %arg5[%c3_140, %c0_141, %c0_142, %c0_143] : memref<4x4x21x21xf32, #tpu.memory_space<vmem>>, vector<1x1x21x21xf32>
    %192 = vector.shape_cast %191 : vector<1x1x21x21xf32> to vector<21x21xf32>
    %c4_144 = arith.constant 4 : index
    %193 = memref.load %arg0[%c4_144] : memref<8xf32, #tpu.memory_space<smem>>
    %194 = vector.broadcast %193 : f32 to vector<21x21xf32>
    %195 = arith.mulf %192, %194 : vector<21x21xf32>
    %c3_145 = arith.constant 3 : index
    %c1_146 = arith.constant 1 : index
    %c0_147 = arith.constant 0 : index
    %c0_148 = arith.constant 0 : index
    %196 = vector.load %arg5[%c3_145, %c1_146, %c0_147, %c0_148] : memref<4x4x21x21xf32, #tpu.memory_space<vmem>>, vector<1x1x21x21xf32>
    %197 = vector.shape_cast %196 : vector<1x1x21x21xf32> to vector<21x21xf32>
    %c5_149 = arith.constant 5 : index
    %198 = memref.load %arg0[%c5_149] : memref<8xf32, #tpu.memory_space<smem>>
    %199 = vector.broadcast %198 : f32 to vector<21x21xf32>
    %200 = arith.mulf %197, %199 : vector<21x21xf32>
    %201 = arith.addf %195, %200 : vector<21x21xf32>
    %c3_150 = arith.constant 3 : index
    %c2_151 = arith.constant 2 : index
    %c0_152 = arith.constant 0 : index
    %c0_153 = arith.constant 0 : index
    %202 = vector.load %arg5[%c3_150, %c2_151, %c0_152, %c0_153] : memref<4x4x21x21xf32, #tpu.memory_space<vmem>>, vector<1x1x21x21xf32>
    %203 = vector.shape_cast %202 : vector<1x1x21x21xf32> to vector<21x21xf32>
    %c6_154 = arith.constant 6 : index
    %204 = memref.load %arg0[%c6_154] : memref<8xf32, #tpu.memory_space<smem>>
    %205 = vector.broadcast %204 : f32 to vector<21x21xf32>
    %206 = arith.mulf %203, %205 : vector<21x21xf32>
    %207 = arith.addf %201, %206 : vector<21x21xf32>
    %c3_155 = arith.constant 3 : index
    %c3_156 = arith.constant 3 : index
    %c0_157 = arith.constant 0 : index
    %c0_158 = arith.constant 0 : index
    %208 = vector.load %arg5[%c3_155, %c3_156, %c0_157, %c0_158] : memref<4x4x21x21xf32, #tpu.memory_space<vmem>>, vector<1x1x21x21xf32>
    %209 = vector.shape_cast %208 : vector<1x1x21x21xf32> to vector<21x21xf32>
    %c7_159 = arith.constant 7 : index
    %210 = memref.load %arg0[%c7_159] : memref<8xf32, #tpu.memory_space<smem>>
    %211 = vector.broadcast %210 : f32 to vector<21x21xf32>
    %212 = arith.mulf %209, %211 : vector<21x21xf32>
    %213 = arith.addf %207, %212 : vector<21x21xf32>
    %214 = vector.broadcast %109 : f32 to vector<21x21xf32>
    %215 = arith.addf %213, %214 : vector<21x21xf32>
    %cst_160 = arith.constant 0.000000e+00 : f32
    %216 = vector.broadcast %cst_160 : f32 to vector<21x21xf32>
    %217 = arith.maximumf %215, %216 : vector<21x21xf32>
    %c0_161 = arith.constant 0 : index
    %218 = memref.load %arg2[%c0_161] : memref<16xf32, #tpu.memory_space<smem>>
    %219 = vector.broadcast %218 : f32 to vector<21x21xf32>
    %220 = arith.mulf %27, %219 : vector<21x21xf32>
    %c1_162 = arith.constant 1 : index
    %221 = memref.load %arg2[%c1_162] : memref<16xf32, #tpu.memory_space<smem>>
    %222 = vector.broadcast %221 : f32 to vector<21x21xf32>
    %223 = arith.mulf %54, %222 : vector<21x21xf32>
    %224 = arith.addf %220, %223 : vector<21x21xf32>
    %c2_163 = arith.constant 2 : index
    %225 = memref.load %arg2[%c2_163] : memref<16xf32, #tpu.memory_space<smem>>
    %226 = vector.broadcast %225 : f32 to vector<21x21xf32>
    %227 = arith.mulf %81, %226 : vector<21x21xf32>
    %228 = arith.addf %224, %227 : vector<21x21xf32>
    %c3_164 = arith.constant 3 : index
    %229 = memref.load %arg2[%c3_164] : memref<16xf32, #tpu.memory_space<smem>>
    %230 = vector.broadcast %229 : f32 to vector<21x21xf32>
    %231 = arith.mulf %108, %230 : vector<21x21xf32>
    %232 = arith.addf %228, %231 : vector<21x21xf32>
    %c4_165 = arith.constant 4 : index
    %233 = memref.load %arg2[%c4_165] : memref<16xf32, #tpu.memory_space<smem>>
    %234 = vector.broadcast %233 : f32 to vector<21x21xf32>
    %235 = arith.mulf %136, %234 : vector<21x21xf32>
    %236 = arith.addf %232, %235 : vector<21x21xf32>
    %c5_166 = arith.constant 5 : index
    %237 = memref.load %arg2[%c5_166] : memref<16xf32, #tpu.memory_space<smem>>
    %238 = vector.broadcast %237 : f32 to vector<21x21xf32>
    %239 = arith.mulf %163, %238 : vector<21x21xf32>
    %240 = arith.addf %236, %239 : vector<21x21xf32>
    %c6_167 = arith.constant 6 : index
    %241 = memref.load %arg2[%c6_167] : memref<16xf32, #tpu.memory_space<smem>>
    %242 = vector.broadcast %241 : f32 to vector<21x21xf32>
    %243 = arith.mulf %190, %242 : vector<21x21xf32>
    %244 = arith.addf %240, %243 : vector<21x21xf32>
    %c7_168 = arith.constant 7 : index
    %245 = memref.load %arg2[%c7_168] : memref<16xf32, #tpu.memory_space<smem>>
    %246 = vector.broadcast %245 : f32 to vector<21x21xf32>
    %247 = arith.mulf %217, %246 : vector<21x21xf32>
    %248 = arith.addf %244, %247 : vector<21x21xf32>
    %c0_169 = arith.constant 0 : index
    %249 = memref.load %arg3[%c0_169] : memref<2xf32, #tpu.memory_space<smem>>
    %250 = vector.broadcast %249 : f32 to vector<21x21xf32>
    %251 = arith.addf %248, %250 : vector<21x21xf32>
    %cst_170 = arith.constant 0.000000e+00 : f32
    %252 = vector.broadcast %cst_170 : f32 to vector<21x21xf32>
    %253 = arith.maximumf %251, %252 : vector<21x21xf32>
    %c8 = arith.constant 8 : index
    %254 = memref.load %arg2[%c8] : memref<16xf32, #tpu.memory_space<smem>>
    %255 = vector.broadcast %254 : f32 to vector<21x21xf32>
    %256 = arith.mulf %27, %255 : vector<21x21xf32>
    %c9 = arith.constant 9 : index
    %257 = memref.load %arg2[%c9] : memref<16xf32, #tpu.memory_space<smem>>
    %258 = vector.broadcast %257 : f32 to vector<21x21xf32>
    %259 = arith.mulf %54, %258 : vector<21x21xf32>
    %260 = arith.addf %256, %259 : vector<21x21xf32>
    %c10 = arith.constant 10 : index
    %261 = memref.load %arg2[%c10] : memref<16xf32, #tpu.memory_space<smem>>
    %262 = vector.broadcast %261 : f32 to vector<21x21xf32>
    %263 = arith.mulf %81, %262 : vector<21x21xf32>
    %264 = arith.addf %260, %263 : vector<21x21xf32>
    %c11 = arith.constant 11 : index
    %265 = memref.load %arg2[%c11] : memref<16xf32, #tpu.memory_space<smem>>
    %266 = vector.broadcast %265 : f32 to vector<21x21xf32>
    %267 = arith.mulf %108, %266 : vector<21x21xf32>
    %268 = arith.addf %264, %267 : vector<21x21xf32>
    %c12 = arith.constant 12 : index
    %269 = memref.load %arg2[%c12] : memref<16xf32, #tpu.memory_space<smem>>
    %270 = vector.broadcast %269 : f32 to vector<21x21xf32>
    %271 = arith.mulf %136, %270 : vector<21x21xf32>
    %272 = arith.addf %268, %271 : vector<21x21xf32>
    %c13 = arith.constant 13 : index
    %273 = memref.load %arg2[%c13] : memref<16xf32, #tpu.memory_space<smem>>
    %274 = vector.broadcast %273 : f32 to vector<21x21xf32>
    %275 = arith.mulf %163, %274 : vector<21x21xf32>
    %276 = arith.addf %272, %275 : vector<21x21xf32>
    %c14 = arith.constant 14 : index
    %277 = memref.load %arg2[%c14] : memref<16xf32, #tpu.memory_space<smem>>
    %278 = vector.broadcast %277 : f32 to vector<21x21xf32>
    %279 = arith.mulf %190, %278 : vector<21x21xf32>
    %280 = arith.addf %276, %279 : vector<21x21xf32>
    %c15 = arith.constant 15 : index
    %281 = memref.load %arg2[%c15] : memref<16xf32, #tpu.memory_space<smem>>
    %282 = vector.broadcast %281 : f32 to vector<21x21xf32>
    %283 = arith.mulf %217, %282 : vector<21x21xf32>
    %284 = arith.addf %280, %283 : vector<21x21xf32>
    %c1_171 = arith.constant 1 : index
    %285 = memref.load %arg3[%c1_171] : memref<2xf32, #tpu.memory_space<smem>>
    %286 = vector.broadcast %285 : f32 to vector<21x21xf32>
    %287 = arith.addf %284, %286 : vector<21x21xf32>
    %cst_172 = arith.constant 0.000000e+00 : f32
    %288 = vector.broadcast %cst_172 : f32 to vector<21x21xf32>
    %289 = arith.maximumf %287, %288 : vector<21x21xf32>
    %290 = tpu.iota {dimensions = array<i32: 1>} : vector<1x6xi32>
    %cst_173 = arith.constant 0.000000e+00 : f32
    %291 = vector.broadcast %cst_173 : f32 to vector<1x6xf32>
    %c0_174 = arith.constant 0 : index
    %c0_175 = arith.constant 0 : index
    %c0_176 = arith.constant 0 : index
    %c0_177 = arith.constant 0 : index
    %292 = vector.load %arg6[%c0_174, %c0_175, %c0_176, %c0_177] : memref<2x6x21x21xf32, #tpu.memory_space<vmem>>, vector<1x1x21x21xf32>
    %293 = vector.shape_cast %292 : vector<1x1x21x21xf32> to vector<21x21xf32>
    %294 = arith.mulf %253, %293 : vector<21x21xf32>
    %c1_178 = arith.constant 1 : index
    %c0_179 = arith.constant 0 : index
    %c0_180 = arith.constant 0 : index
    %c0_181 = arith.constant 0 : index
    %295 = vector.load %arg6[%c1_178, %c0_179, %c0_180, %c0_181] : memref<2x6x21x21xf32, #tpu.memory_space<vmem>>, vector<1x1x21x21xf32>
    %296 = vector.shape_cast %295 : vector<1x1x21x21xf32> to vector<21x21xf32>
    %297 = arith.mulf %289, %296 : vector<21x21xf32>
    %298 = arith.addf %294, %297 : vector<21x21xf32>
    %299 = vector.shape_cast %298 : vector<21x21xf32> to vector<1x21x21xf32>
    %cst_182 = arith.constant dense<0.000000e+00> : vector<1xf32>
    %300 = vector.multi_reduction <add>, %299, %cst_182 [1, 2] : vector<1x21x21xf32> to vector<1xf32>
    %301 = vector.shape_cast %300 : vector<1xf32> to vector<1x1x1xf32>
    %302 = vector.extract %301[0, 0, 0] : f32 from vector<1x1x1xf32>
    %303 = vector.broadcast %302 : f32 to vector<1x1xf32>
    %c0_183 = arith.constant 0 : index
    %304 = memref.load %arg4[%c0_183] : memref<6xf32, #tpu.memory_space<smem>>
    %305 = vector.broadcast %304 : f32 to vector<1x1xf32>
    %306 = arith.addf %303, %305 : vector<1x1xf32>
    %c0_i32 = arith.constant 0 : i32
    %307 = vector.broadcast %c0_i32 : i32 to vector<1x6xi32>
    %308 = arith.cmpi eq, %290, %307 : vector<1x6xi32>
    %cst_184 = arith.constant 0.000000e+00 : f32
    %309 = vector.shape_cast %306 : vector<1x1xf32> to vector<1x1xf32>
    %310 = vector.broadcast %309 : vector<1x1xf32> to vector<1x6xf32>
    %311 = vector.broadcast %cst_184 : f32 to vector<1x6xf32>
    %312 = arith.select %308, %310, %311 : vector<1x6xi1>, vector<1x6xf32>
    %313 = arith.addf %291, %312 : vector<1x6xf32>
    %c0_185 = arith.constant 0 : index
    %c1_186 = arith.constant 1 : index
    %c0_187 = arith.constant 0 : index
    %c0_188 = arith.constant 0 : index
    %314 = vector.load %arg6[%c0_185, %c1_186, %c0_187, %c0_188] : memref<2x6x21x21xf32, #tpu.memory_space<vmem>>, vector<1x1x21x21xf32>
    %315 = vector.shape_cast %314 : vector<1x1x21x21xf32> to vector<21x21xf32>
    %316 = arith.mulf %253, %315 : vector<21x21xf32>
    %c1_189 = arith.constant 1 : index
    %c1_190 = arith.constant 1 : index
    %c0_191 = arith.constant 0 : index
    %c0_192 = arith.constant 0 : index
    %317 = vector.load %arg6[%c1_189, %c1_190, %c0_191, %c0_192] : memref<2x6x21x21xf32, #tpu.memory_space<vmem>>, vector<1x1x21x21xf32>
    %318 = vector.shape_cast %317 : vector<1x1x21x21xf32> to vector<21x21xf32>
    %319 = arith.mulf %289, %318 : vector<21x21xf32>
    %320 = arith.addf %316, %319 : vector<21x21xf32>
    %321 = vector.shape_cast %320 : vector<21x21xf32> to vector<1x21x21xf32>
    %cst_193 = arith.constant dense<0.000000e+00> : vector<1xf32>
    %322 = vector.multi_reduction <add>, %321, %cst_193 [1, 2] : vector<1x21x21xf32> to vector<1xf32>
    %323 = vector.shape_cast %322 : vector<1xf32> to vector<1x1x1xf32>
    %324 = vector.extract %323[0, 0, 0] : f32 from vector<1x1x1xf32>
    %325 = vector.broadcast %324 : f32 to vector<1x1xf32>
    %c1_194 = arith.constant 1 : index
    %326 = memref.load %arg4[%c1_194] : memref<6xf32, #tpu.memory_space<smem>>
    %327 = vector.broadcast %326 : f32 to vector<1x1xf32>
    %328 = arith.addf %325, %327 : vector<1x1xf32>
    %c1_i32 = arith.constant 1 : i32
    %329 = vector.broadcast %c1_i32 : i32 to vector<1x6xi32>
    %330 = arith.cmpi eq, %290, %329 : vector<1x6xi32>
    %cst_195 = arith.constant 0.000000e+00 : f32
    %331 = vector.shape_cast %328 : vector<1x1xf32> to vector<1x1xf32>
    %332 = vector.broadcast %331 : vector<1x1xf32> to vector<1x6xf32>
    %333 = vector.broadcast %cst_195 : f32 to vector<1x6xf32>
    %334 = arith.select %330, %332, %333 : vector<1x6xi1>, vector<1x6xf32>
    %335 = arith.addf %313, %334 : vector<1x6xf32>
    %c0_196 = arith.constant 0 : index
    %c2_197 = arith.constant 2 : index
    %c0_198 = arith.constant 0 : index
    %c0_199 = arith.constant 0 : index
    %336 = vector.load %arg6[%c0_196, %c2_197, %c0_198, %c0_199] : memref<2x6x21x21xf32, #tpu.memory_space<vmem>>, vector<1x1x21x21xf32>
    %337 = vector.shape_cast %336 : vector<1x1x21x21xf32> to vector<21x21xf32>
    %338 = arith.mulf %253, %337 : vector<21x21xf32>
    %c1_200 = arith.constant 1 : index
    %c2_201 = arith.constant 2 : index
    %c0_202 = arith.constant 0 : index
    %c0_203 = arith.constant 0 : index
    %339 = vector.load %arg6[%c1_200, %c2_201, %c0_202, %c0_203] : memref<2x6x21x21xf32, #tpu.memory_space<vmem>>, vector<1x1x21x21xf32>
    %340 = vector.shape_cast %339 : vector<1x1x21x21xf32> to vector<21x21xf32>
    %341 = arith.mulf %289, %340 : vector<21x21xf32>
    %342 = arith.addf %338, %341 : vector<21x21xf32>
    %343 = vector.shape_cast %342 : vector<21x21xf32> to vector<1x21x21xf32>
    %cst_204 = arith.constant dense<0.000000e+00> : vector<1xf32>
    %344 = vector.multi_reduction <add>, %343, %cst_204 [1, 2] : vector<1x21x21xf32> to vector<1xf32>
    %345 = vector.shape_cast %344 : vector<1xf32> to vector<1x1x1xf32>
    %346 = vector.extract %345[0, 0, 0] : f32 from vector<1x1x1xf32>
    %347 = vector.broadcast %346 : f32 to vector<1x1xf32>
    %c2_205 = arith.constant 2 : index
    %348 = memref.load %arg4[%c2_205] : memref<6xf32, #tpu.memory_space<smem>>
    %349 = vector.broadcast %348 : f32 to vector<1x1xf32>
    %350 = arith.addf %347, %349 : vector<1x1xf32>
    %c2_i32 = arith.constant 2 : i32
    %351 = vector.broadcast %c2_i32 : i32 to vector<1x6xi32>
    %352 = arith.cmpi eq, %290, %351 : vector<1x6xi32>
    %cst_206 = arith.constant 0.000000e+00 : f32
    %353 = vector.shape_cast %350 : vector<1x1xf32> to vector<1x1xf32>
    %354 = vector.broadcast %353 : vector<1x1xf32> to vector<1x6xf32>
    %355 = vector.broadcast %cst_206 : f32 to vector<1x6xf32>
    %356 = arith.select %352, %354, %355 : vector<1x6xi1>, vector<1x6xf32>
    %357 = arith.addf %335, %356 : vector<1x6xf32>
    %c0_207 = arith.constant 0 : index
    %c3_208 = arith.constant 3 : index
    %c0_209 = arith.constant 0 : index
    %c0_210 = arith.constant 0 : index
    %358 = vector.load %arg6[%c0_207, %c3_208, %c0_209, %c0_210] : memref<2x6x21x21xf32, #tpu.memory_space<vmem>>, vector<1x1x21x21xf32>
    %359 = vector.shape_cast %358 : vector<1x1x21x21xf32> to vector<21x21xf32>
    %360 = arith.mulf %253, %359 : vector<21x21xf32>
    %c1_211 = arith.constant 1 : index
    %c3_212 = arith.constant 3 : index
    %c0_213 = arith.constant 0 : index
    %c0_214 = arith.constant 0 : index
    %361 = vector.load %arg6[%c1_211, %c3_212, %c0_213, %c0_214] : memref<2x6x21x21xf32, #tpu.memory_space<vmem>>, vector<1x1x21x21xf32>
    %362 = vector.shape_cast %361 : vector<1x1x21x21xf32> to vector<21x21xf32>
    %363 = arith.mulf %289, %362 : vector<21x21xf32>
    %364 = arith.addf %360, %363 : vector<21x21xf32>
    %365 = vector.shape_cast %364 : vector<21x21xf32> to vector<1x21x21xf32>
    %cst_215 = arith.constant dense<0.000000e+00> : vector<1xf32>
    %366 = vector.multi_reduction <add>, %365, %cst_215 [1, 2] : vector<1x21x21xf32> to vector<1xf32>
    %367 = vector.shape_cast %366 : vector<1xf32> to vector<1x1x1xf32>
    %368 = vector.extract %367[0, 0, 0] : f32 from vector<1x1x1xf32>
    %369 = vector.broadcast %368 : f32 to vector<1x1xf32>
    %c3_216 = arith.constant 3 : index
    %370 = memref.load %arg4[%c3_216] : memref<6xf32, #tpu.memory_space<smem>>
    %371 = vector.broadcast %370 : f32 to vector<1x1xf32>
    %372 = arith.addf %369, %371 : vector<1x1xf32>
    %c3_i32 = arith.constant 3 : i32
    %373 = vector.broadcast %c3_i32 : i32 to vector<1x6xi32>
    %374 = arith.cmpi eq, %290, %373 : vector<1x6xi32>
    %cst_217 = arith.constant 0.000000e+00 : f32
    %375 = vector.shape_cast %372 : vector<1x1xf32> to vector<1x1xf32>
    %376 = vector.broadcast %375 : vector<1x1xf32> to vector<1x6xf32>
    %377 = vector.broadcast %cst_217 : f32 to vector<1x6xf32>
    %378 = arith.select %374, %376, %377 : vector<1x6xi1>, vector<1x6xf32>
    %379 = arith.addf %357, %378 : vector<1x6xf32>
    %c0_218 = arith.constant 0 : index
    %c4_219 = arith.constant 4 : index
    %c0_220 = arith.constant 0 : index
    %c0_221 = arith.constant 0 : index
    %380 = vector.load %arg6[%c0_218, %c4_219, %c0_220, %c0_221] : memref<2x6x21x21xf32, #tpu.memory_space<vmem>>, vector<1x1x21x21xf32>
    %381 = vector.shape_cast %380 : vector<1x1x21x21xf32> to vector<21x21xf32>
    %382 = arith.mulf %253, %381 : vector<21x21xf32>
    %c1_222 = arith.constant 1 : index
    %c4_223 = arith.constant 4 : index
    %c0_224 = arith.constant 0 : index
    %c0_225 = arith.constant 0 : index
    %383 = vector.load %arg6[%c1_222, %c4_223, %c0_224, %c0_225] : memref<2x6x21x21xf32, #tpu.memory_space<vmem>>, vector<1x1x21x21xf32>
    %384 = vector.shape_cast %383 : vector<1x1x21x21xf32> to vector<21x21xf32>
    %385 = arith.mulf %289, %384 : vector<21x21xf32>
    %386 = arith.addf %382, %385 : vector<21x21xf32>
    %387 = vector.shape_cast %386 : vector<21x21xf32> to vector<1x21x21xf32>
    %cst_226 = arith.constant dense<0.000000e+00> : vector<1xf32>
    %388 = vector.multi_reduction <add>, %387, %cst_226 [1, 2] : vector<1x21x21xf32> to vector<1xf32>
    %389 = vector.shape_cast %388 : vector<1xf32> to vector<1x1x1xf32>
    %390 = vector.extract %389[0, 0, 0] : f32 from vector<1x1x1xf32>
    %391 = vector.broadcast %390 : f32 to vector<1x1xf32>
    %c4_227 = arith.constant 4 : index
    %392 = memref.load %arg4[%c4_227] : memref<6xf32, #tpu.memory_space<smem>>
    %393 = vector.broadcast %392 : f32 to vector<1x1xf32>
    %394 = arith.addf %391, %393 : vector<1x1xf32>
    %c4_i32 = arith.constant 4 : i32
    %395 = vector.broadcast %c4_i32 : i32 to vector<1x6xi32>
    %396 = arith.cmpi eq, %290, %395 : vector<1x6xi32>
    %cst_228 = arith.constant 0.000000e+00 : f32
    %397 = vector.shape_cast %394 : vector<1x1xf32> to vector<1x1xf32>
    %398 = vector.broadcast %397 : vector<1x1xf32> to vector<1x6xf32>
    %399 = vector.broadcast %cst_228 : f32 to vector<1x6xf32>
    %400 = arith.select %396, %398, %399 : vector<1x6xi1>, vector<1x6xf32>
    %401 = arith.addf %379, %400 : vector<1x6xf32>
    %c0_229 = arith.constant 0 : index
    %c5_230 = arith.constant 5 : index
    %c0_231 = arith.constant 0 : index
    %c0_232 = arith.constant 0 : index
    %402 = vector.load %arg6[%c0_229, %c5_230, %c0_231, %c0_232] : memref<2x6x21x21xf32, #tpu.memory_space<vmem>>, vector<1x1x21x21xf32>
    %403 = vector.shape_cast %402 : vector<1x1x21x21xf32> to vector<21x21xf32>
    %404 = arith.mulf %253, %403 : vector<21x21xf32>
    %c1_233 = arith.constant 1 : index
    %c5_234 = arith.constant 5 : index
    %c0_235 = arith.constant 0 : index
    %c0_236 = arith.constant 0 : index
    %405 = vector.load %arg6[%c1_233, %c5_234, %c0_235, %c0_236] : memref<2x6x21x21xf32, #tpu.memory_space<vmem>>, vector<1x1x21x21xf32>
    %406 = vector.shape_cast %405 : vector<1x1x21x21xf32> to vector<21x21xf32>
    %407 = arith.mulf %289, %406 : vector<21x21xf32>
    %408 = arith.addf %404, %407 : vector<21x21xf32>
    %409 = vector.shape_cast %408 : vector<21x21xf32> to vector<1x21x21xf32>
    %cst_237 = arith.constant dense<0.000000e+00> : vector<1xf32>
    %410 = vector.multi_reduction <add>, %409, %cst_237 [1, 2] : vector<1x21x21xf32> to vector<1xf32>
    %411 = vector.shape_cast %410 : vector<1xf32> to vector<1x1x1xf32>
    %412 = vector.extract %411[0, 0, 0] : f32 from vector<1x1x1xf32>
    %413 = vector.broadcast %412 : f32 to vector<1x1xf32>
    %c5_238 = arith.constant 5 : index
    %414 = memref.load %arg4[%c5_238] : memref<6xf32, #tpu.memory_space<smem>>
    %415 = vector.broadcast %414 : f32 to vector<1x1xf32>
    %416 = arith.addf %413, %415 : vector<1x1xf32>
    %c5_i32 = arith.constant 5 : i32
    %417 = vector.broadcast %c5_i32 : i32 to vector<1x6xi32>
    %418 = arith.cmpi eq, %290, %417 : vector<1x6xi32>
    %cst_239 = arith.constant 0.000000e+00 : f32
    %419 = vector.shape_cast %416 : vector<1x1xf32> to vector<1x1xf32>
    %420 = vector.broadcast %419 : vector<1x1xf32> to vector<1x6xf32>
    %421 = vector.broadcast %cst_239 : f32 to vector<1x6xf32>
    %422 = arith.select %418, %420, %421 : vector<1x6xi1>, vector<1x6xf32>
    %423 = arith.addf %401, %422 : vector<1x6xf32>
    %cst_240 = arith.constant dense<0xFF800000> : vector<1xf32>
    %424 = vector.multi_reduction <maximumf>, %423, %cst_240 [1] : vector<1x6xf32> to vector<1xf32>
    %425 = vector.shape_cast %424 : vector<1xf32> to vector<1x1xf32>
    %426 = vector.broadcast %425 : vector<1x1xf32> to vector<1x6xf32>
    %427 = arith.subf %423, %426 : vector<1x6xf32>
    %428 = math.exp %427 : vector<1x6xf32>
    %cst_241 = arith.constant dense<0.000000e+00> : vector<1xf32>
    %429 = vector.multi_reduction <add>, %428, %cst_241 [1] : vector<1x6xf32> to vector<1xf32>
    %430 = vector.shape_cast %429 : vector<1xf32> to vector<1x1xf32>
    %431 = tpu.reciprocal %430 {approx = true} : vector<1x1xf32> -> vector<1x1xf32>
    %432 = vector.broadcast %431 : vector<1x1xf32> to vector<1x6xf32>
    %433 = arith.mulf %428, %432 : vector<1x6xf32>
    %c0_242 = arith.constant 0 : index
    %c0_243 = arith.constant 0 : index
    %434 = vector.load %arg7[%c0_242, %c0_243] : memref<1x6xf32, #tpu.memory_space<vmem>>, vector<1x6xf32>
    tpu.vector_store %arg7[%c0_242, %c0_243], %433 {strides = array<i32>} : memref<1x6xf32, #tpu.memory_space<vmem>>, vector<1x6xf32>,
    return
  }
}

</mosaic_0001>

<llo_original>
// kernel: policy_forward.1
$region0: #{policy_forward.1}
  #allocation0 [shape = 'u32[]', space=smem, size = 0x4, offset = 0x4, fixed_abs, tag = 'smem constant byte address 0x4 - core index']
  #allocation1 [shape = 'u32[72,128]{1,0:T(1,128)}', space=vmem, size = 0x9000, scoped, tag = 'internal scratch']
  %s0 = inlined_call_operand.vmem [shape: f32[8], index: 0, kind: input, shape index: {}]
  %s1 = inlined_call_operand.vmem [shape: f32[2], index: 1, kind: input, shape index: {}]
  %s2 = inlined_call_operand.vmem [shape: f32[16], index: 2, kind: input, shape index: {}]
  %s3 = inlined_call_operand.vmem [shape: f32[2], index: 3, kind: input, shape index: {}]
  %s4 = inlined_call_operand.vmem [shape: f32[6], index: 4, kind: input, shape index: {}]
  %s5 = inlined_call_operand.vmem [shape: f32[4,4,21,21], index: 5, kind: input, shape index: {}]
  %s6 = inlined_call_operand.vmem [shape: f32[2,6,21,21], index: 6, kind: input, shape index: {}]
  %s7 = inlined_call_operand.hbm [shape: f32[1,6], index: 7, kind: output, shape index: {}]
  %s8 = sld [smem:[#allocation0]]
  $region58: #{policy_forward.1} parent=0
    _
  %s10 = ssub.s32 1, %s8
  %s11 = scalar_select 0, %s10, %s8
  $region1: #{policy_forward.1} parent=0
    #allocation2 [shape = 'u8[512]{0}', space=smem, size = 0x200, scoped, tag = 'input window, operand 0, single buffered']
    #allocation3 [shape = 's32[1]{0}', space=sflag, size = 0x4, scoped, tag = 'scoped memory for policy_forward.1']
    #allocation4 [shape = 's32[1]{0}', space=sflag, size = 0x4, scoped, tag = 'scoped memory for policy_forward.1']
    #allocation5 [shape = 'u8[512]{0}', space=smem, size = 0x200, scoped, tag = 'input window, operand 1, single buffered']
    #allocation6 [shape = 's32[1]{0}', space=sflag, size = 0x4, scoped, tag = 'scoped memory for policy_forward.1']
    #allocation7 [shape = 'u8[512]{0}', space=smem, size = 0x200, scoped, tag = 'input window, operand 2, single buffered']
    #allocation8 [shape = 'u8[512]{0}', space=smem, size = 0x200, scoped, tag = 'input window, operand 3, single buffered']
    #allocation9 [shape = 's32[1]{0}', space=sflag, size = 0x4, scoped, tag = 'scoped memory for policy_forward.1']
    #allocation10 [shape = 'u8[512]{0}', space=smem, size = 0x200, scoped, tag = 'input window, operand 4, single buffered']
    #allocation11 [shape = 'u8[512]{0}', space=vmem, size = 0x400, scoped, tag = 'output window, operand 0, single buffered']
    %12 = vsyncpa [#allocation4], 0
    %13 = vsyncpa [#allocation6], 0
    %14 = vsyncpa [#allocation9], 0
    %15 = vsyncpa [#allocation3], 0
    // Predicated region
    $region2: #{policy_forward.1} parent=1 // pred_check
      _
    $region3: #{policy_forward.1} parent=1 // pred_check_branch
      %17 = sbr.rel (0) target = $region5
    $region4: #{policy_forward.1} parent=1 // pred_region
      %19 = vsyncadd [#allocation4], 0
      %s21 = sshll.u32 %s0, 4
      %s22 = int_to_ptr.vmem [resolvable:$true] %s21
      %24 = dma.vmem_to_smem %s22, 16, [#allocation2], [#allocation4]
    $region5: #{policy_forward.1} parent=1 // pred_fallthru
      _
    // Predicated region
    $region6: #{policy_forward.1} parent=1 // pred_check
      _
    $region7: #{policy_forward.1} parent=1 // pred_check_branch
      %26 = sbr.rel (0) target = $region9
    $region8: #{policy_forward.1} parent=1 // pred_region
      %28 = vsyncadd [#allocation6], 0
      %s30 = sshll.u32 %s1, 4
      %s31 = int_to_ptr.vmem [resolvable:$true] %s30
      %33 = dma.vmem_to_smem %s31, 16, [#allocation5], [#allocation6]
    $region9: #{policy_forward.1} parent=1 // pred_fallthru
      _
    // Predicated region
    $region10: #{policy_forward.1} parent=1 // pred_check
      _
    $region11: #{policy_forward.1} parent=1 // pred_check_branch
      %35 = sbr.rel (0) target = $region13
    $region12: #{policy_forward.1} parent=1 // pred_region
      %37 = vsyncadd [#allocation6], 0
      %s39 = sshll.u32 %s2, 4
      %s40 = int_to_ptr.vmem [resolvable:$true] %s39
      %42 = dma.vmem_to_smem %s40, 16, [#allocation7], [#allocation6]
    $region13: #{policy_forward.1} parent=1 // pred_fallthru
      _
    // Predicated region
    $region14: #{policy_forward.1} parent=1 // pred_check
      _
    $region15: #{policy_forward.1} parent=1 // pred_check_branch
      %44 = sbr.rel (0) target = $region17
    $region16: #{policy_forward.1} parent=1 // pred_region
      %46 = vsyncadd [#allocation9], 0
      %s48 = sshll.u32 %s3, 4
      %s49 = int_to_ptr.vmem [resolvable:$true] %s48
      %51 = dma.vmem_to_smem %s49, 16, [#allocation8], [#allocation9]
    $region17: #{policy_forward.1} parent=1 // pred_fallthru
      _
    // Predicated region
    $region18: #{policy_forward.1} parent=1 // pred_check
      _
    $region19: #{policy_forward.1} parent=1 // pred_check_branch
      %53 = sbr.rel (0) target = $region21
    $region20: #{policy_forward.1} parent=1 // pred_region
      %55 = vsyncadd [#allocation9], 0
      %s57 = sshll.u32 %s4, 4
      %s58 = int_to_ptr.vmem [resolvable:$true] %s57
      %60 = dma.vmem_to_smem %s58, 16, [#allocation10], [#allocation9]
    $region21: #{policy_forward.1} parent=1 // pred_fallthru
      _
    // Predicated region
    $region22: #{policy_forward.1} parent=1 // pred_check
      _
    $region23: #{policy_forward.1} parent=1 // pred_check_branch
      %62 = sbr.rel (0) target = $region25
    $region24: #{policy_forward.1} parent=1 // pred_region
      _
    $region25: #{policy_forward.1} parent=1 // pred_fallthru
      _
    // Predicated region
    $region26: #{policy_forward.1} parent=1 // pred_check
      _
    $region27: #{policy_forward.1} parent=1 // pred_check_branch
      %64 = sbr.rel (0) target = $region29
    $region28: #{policy_forward.1} parent=1 // pred_region
      _
    $region29: #{policy_forward.1} parent=1 // pred_fallthru
      _
    // Predicated region
    $region30: #{policy_forward.1} parent=1 // pred_check
      _
    $region31: #{policy_forward.1} parent=1 // pred_check_branch
      %66 = sbr.rel (0) target = $region33
    $region32: #{policy_forward.1} parent=1 // pred_region
      %68 = dma.done [#allocation4], 16
    $region33: #{policy_forward.1} parent=1 // pred_fallthru
      _
    // Predicated region
    $region34: #{policy_forward.1} parent=1 // pred_check
      _
    $region35: #{policy_forward.1} parent=1 // pred_check_branch
      %70 = sbr.rel (0) target = $region37
    $region36: #{policy_forward.1} parent=1 // pred_region
      %72 = dma.done [#allocation6], 16
    $region37: #{policy_forward.1} parent=1 // pred_fallthru
      _
    // Predicated region
    $region38: #{policy_forward.1} parent=1 // pred_check
      _
    $region39: #{policy_forward.1} parent=1 // pred_check_branch
      %74 = sbr.rel (0) target = $region41
    $region40: #{policy_forward.1} parent=1 // pred_region
      %76 = dma.done [#allocation6], 16
    $region41: #{policy_forward.1} parent=1 // pred_fallthru
      _
    // Predicated region
    $region42: #{policy_forward.1} parent=1 // pred_check
      _
    $region43: #{policy_forward.1} parent=1 // pred_check_branch
      %78 = sbr.rel (0) target = $region45
    $region44: #{policy_forward.1} parent=1 // pred_region
      %80 = dma.done [#allocation9], 16
    $region45: #{policy_forward.1} parent=1 // pred_fallthru
      _
    // Predicated region
    $region46: #{policy_forward.1} parent=1 // pred_check
      _
    $region47: #{policy_forward.1} parent=1 // pred_check_branch
      %82 = sbr.rel (0) target = $region49
    $region48: #{policy_forward.1} parent=1 // pred_region
      %84 = dma.done [#allocation9], 16
    $region49: #{policy_forward.1} parent=1 // pred_fallthru
      _
    %85 = sfence
    %s86 = sld [smem:[#allocation5]]
    %v87 = vld [vmem:[%s5] sm:$0xff]
    %v88 = vld [vmem:[%s5 + $0x8] sm:$0xff]
    %v89 = vld [vmem:[%s5 + $0x10] sm:$0x1f]
    %s90 = sld [smem:[#allocation2]]
    %v91 = vstv %s90
    %v92 = vmul.f32 %v87, %v91
    %v93 = vmul.f32 %v88, %v91
    %v94 = vmul.f32 %v89, %v91
    %s95 = scalar_lea.vmem %s5, 24
    %v96 = vld [vmem:[%s95] sm:$0xff]
    %v97 = vld [vmem:[%s95 + $0x8] sm:$0xff]
    %v98 = vld [vmem:[%s95 + $0x10] sm:$0x1f]
    %s99 = sld [smem:[#allocation2 + $0x1]]
    %v100 = vstv %s99
    %v101 = vmul.f32 %v96, %v100
    %v102 = vmul.f32 %v97, %v100
    %v103 = vmul.f32 %v98, %v100
    %v104 = vadd.f32 %v92, %v101
    %v105 = vadd.f32 %v93, %v102
    %v106 = vadd.f32 %v94, %v103
    %s107 = scalar_lea.vmem %s5, 48
    %v108 = vld [vmem:[%s107] sm:$0xff]
    %v109 = vld [vmem:[%s107 + $0x8] sm:$0xff]
    %v110 = vld [vmem:[%s107 + $0x10] sm:$0x1f]
    %s111 = sld [smem:[#allocation2 + $0x2]]
    %v112 = vstv %s111
    %v113 = vmul.f32 %v108, %v112
    %v114 = vmul.f32 %v109, %v112
    %v115 = vmul.f32 %v110, %v112
    %v116 = vadd.f32 %v104, %v113
    %v117 = vadd.f32 %v105, %v114
    %v118 = vadd.f32 %v106, %v115
    %s119 = scalar_lea.vmem %s5, 72
    %v120 = vld [vmem:[%s119] sm:$0xff]
    %v121 = vld [vmem:[%s119 + $0x8] sm:$0xff]
    %v122 = vld [vmem:[%s119 + $0x10] sm:$0x1f]
    %s123 = sld [smem:[#allocation2 + $0x3]]
    %v124 = vstv %s123
    %v125 = vmul.f32 %v120, %v124
    %v126 = vmul.f32 %v121, %v124
    %v127 = vmul.f32 %v122, %v124
    %v128 = vadd.f32 %v116, %v125
    %v129 = vadd.f32 %v117, %v126
    %v130 = vadd.f32 %v118, %v127
    %v131 = vstv %s86
    %v132 = vadd.f32 %v128, %v131
    %v133 = vadd.f32 %v129, %v131
    %v134 = vadd.f32 %v130, %v131
    %v135 = vmax.f32 %v132, 0.0
    %v136 = vmax.f32 %v133, 0.0
    %v137 = vmax.f32 %v134, 0.0
    %s138 = scalar_lea.vmem %s5, 96
    %v139 = vld [vmem:[%s138] sm:$0xff]
    %v140 = vld [vmem:[%s138 + $0x8] sm:$0xff]
    %v141 = vld [vmem:[%s138 + $0x10] sm:$0x1f]
    %v142 = vmul.f32 %v139, %v91
    %v143 = vmul.f32 %v140, %v91
    %v144 = vmul.f32 %v141, %v91
    %s145 = scalar_lea.vmem %s5, 120
    %v146 = vld [vmem:[%s145] sm:$0xff]
    %v147 = vld [vmem:[%s145 + $0x8] sm:$0xff]
    %v148 = vld [vmem:[%s145 + $0x10] sm:$0x1f]
    %v149 = vmul.f32 %v146, %v100
    %v150 = vmul.f32 %v147, %v100
    %v151 = vmul.f32 %v148, %v100
    %v152 = vadd.f32 %v142, %v149
    %v153 = vadd.f32 %v143, %v150
    %v154 = vadd.f32 %v144, %v151
    %s155 = scalar_lea.vmem %s5, 144
    %v156 = vld [vmem:[%s155] sm:$0xff]
    %v157 = vld [vmem:[%s155 + $0x8] sm:$0xff]
    %v158 = vld [vmem:[%s155 + $0x10] sm:$0x1f]
    %v159 = vmul.f32 %v156, %v112
    %v160 = vmul.f32 %v157, %v112
    %v161 = vmul.f32 %v158, %v112
    %v162 = vadd.f32 %v152, %v159
    %v163 = vadd.f32 %v153, %v160
    %v164 = vadd.f32 %v154, %v161
    %s165 = scalar_lea.vmem %s5, 168
    %v166 = vld [vmem:[%s165] sm:$0xff]
    %v167 = vld [vmem:[%s165 + $0x8] sm:$0xff]
    %v168 = vld [vmem:[%s165 + $0x10] sm:$0x1f]
    %v169 = vmul.f32 %v166, %v124
    %v170 = vmul.f32 %v167, %v124
    %v171 = vmul.f32 %v168, %v124
    %v172 = vadd.f32 %v162, %v169
    %v173 = vadd.f32 %v163, %v170
    %v174 = vadd.f32 %v164, %v171
    %v175 = vadd.f32 %v172, %v131
    %v176 = vadd.f32 %v173, %v131
    %v177 = vadd.f32 %v174, %v131
    %v178 = vmax.f32 %v175, 0.0
    %v179 = vmax.f32 %v176, 0.0
    %v180 = vmax.f32 %v177, 0.0
    %s181 = scalar_lea.vmem %s5, 192
    %v182 = vld [vmem:[%s181] sm:$0xff]
    %v183 = vld [vmem:[%s181 + $0x8] sm:$0xff]
    %v184 = vld [vmem:[%s181 + $0x10] sm:$0x1f]
    %v185 = vmul.f32 %v182, %v91
    %v186 = vmul.f32 %v183, %v91
    %v187 = vmul.f32 %v184, %v91
    %s188 = scalar_lea.vmem %s5, 216
    %v189 = vld [vmem:[%s188] sm:$0xff]
    %v190 = vld [vmem:[%s188 + $0x8] sm:$0xff]
    %v191 = vld [vmem:[%s188 + $0x10] sm:$0x1f]
    %v192 = vmul.f32 %v189, %v100
    %v193 = vmul.f32 %v190, %v100
    %v194 = vmul.f32 %v191, %v100
    %v195 = vadd.f32 %v185, %v192
    %v196 = vadd.f32 %v186, %v193
    %v197 = vadd.f32 %v187, %v194
    %s198 = scalar_lea.vmem %s5, 240
    %v199 = vld [vmem:[%s198] sm:$0xff]
    %v200 = vld [vmem:[%s198 + $0x8] sm:$0xff]
    %v201 = vld [vmem:[%s198 + $0x10] sm:$0x1f]
    %v202 = vmul.f32 %v199, %v112
    %v203 = vmul.f32 %v200, %v112
    %v204 = vmul.f32 %v201, %v112
    %v205 = vadd.f32 %v195, %v202
    %v206 = vadd.f32 %v196, %v203
    %v207 = vadd.f32 %v197, %v204
    %s208 = scalar_lea.vmem %s5, 264
    %v209 = vld [vmem:[%s208] sm:$0xff]
    %v210 = vld [vmem:[%s208 + $0x8] sm:$0xff]
    %v211 = vld [vmem:[%s208 + $0x10] sm:$0x1f]
    %v212 = vmul.f32 %v209, %v124
    %v213 = vmul.f32 %v210, %v124
    %v214 = vmul.f32 %v211, %v124
    %v215 = vadd.f32 %v205, %v212
    %v216 = vadd.f32 %v206, %v213
    %v217 = vadd.f32 %v207, %v214
    %v218 = vadd.f32 %v215, %v131
    %v219 = vadd.f32 %v216, %v131
    %v220 = vadd.f32 %v217, %v131
    %v221 = vmax.f32 %v218, 0.0
    %v222 = vmax.f32 %v219, 0.0
    %v223 = vmax.f32 %v220, 0.0
    %s224 = scalar_lea.vmem %s5, 288
    %v225 = vld [vmem:[%s224] sm:$0xff]
    %v226 = vld [vmem:[%s224 + $0x8] sm:$0xff]
    %v227 = vld [vmem:[%s224 + $0x10] sm:$0x1f]
    %v228 = vmul.f32 %v225, %v91
    %v229 = vmul.f32 %v226, %v91
    %v230 = vmul.f32 %v227, %v91
    %s231 = scalar_lea.vmem %s5, 312
    %v232 = vld [vmem:[%s231] sm:$0xff]
    %v233 = vld [vmem:[%s231 + $0x8] sm:$0xff]
    %v234 = vld [vmem:[%s231 + $0x10] sm:$0x1f]
    %v235 = vmul.f32 %v232, %v100
    %v236 = vmul.f32 %v233, %v100
    %v237 = vmul.f32 %v234, %v100
    %v238 = vadd.f32 %v228, %v235
    %v239 = vadd.f32 %v229, %v236
    %v240 = vadd.f32 %v230, %v237
    %s241 = scalar_lea.vmem %s5, 336
    %v242 = vld [vmem:[%s241] sm:$0xff]
    %v243 = vld [vmem:[%s241 + $0x8] sm:$0xff]
    %v244 = vld [vmem:[%s241 + $0x10] sm:$0x1f]
    %v245 = vmul.f32 %v242, %v112
    %v246 = vmul.f32 %v243, %v112
    %v247 = vmul.f32 %v244, %v112
    %v248 = vadd.f32 %v238, %v245
    %v249 = vadd.f32 %v239, %v246
    %v250 = vadd.f32 %v240, %v247
    %s251 = scalar_lea.vmem %s5, 360
    %v252 = vld [vmem:[%s251] sm:$0xff]
    %v253 = vld [vmem:[%s251 + $0x8] sm:$0xff]
    %v254 = vld [vmem:[%s251 + $0x10] sm:$0x1f]
    %v255 = vmul.f32 %v252, %v124
    %v256 = vmul.f32 %v253, %v124
    %v257 = vmul.f32 %v254, %v124
    %v258 = vadd.f32 %v248, %v255
    %v259 = vadd.f32 %v249, %v256
    %v260 = vadd.f32 %v250, %v257
    %v261 = vadd.f32 %v258, %v131
    %v262 = vadd.f32 %v259, %v131
    %v263 = vadd.f32 %v260, %v131
    %v264 = vmax.f32 %v261, 0.0
    %v265 = vmax.f32 %v262, 0.0
    %v266 = vmax.f32 %v263, 0.0
    %s267 = sld [smem:[#allocation5 + $0x1]]
    %s268 = sld [smem:[#allocation2 + $0x4]]
    %v269 = vstv %s268
    %v270 = vmul.f32 %v87, %v269
    %v271 = vmul.f32 %v88, %v269
    %v272 = vmul.f32 %v89, %v269
    %s273 = sld [smem:[#allocation2 + $0x5]]
    %v274 = vstv %s273
    %v275 = vmul.f32 %v96, %v274
    %v276 = vmul.f32 %v97, %v274
    %v277 = vmul.f32 %v98, %v274
    %v278 = vadd.f32 %v270, %v275
    %v279 = vadd.f32 %v271, %v276
    %v280 = vadd.f32 %v272, %v277
    %s281 = sld [smem:[#allocation2 + $0x6]]
    %v282 = vstv %s281
    %v283 = vmul.f32 %v108, %v282
    %v284 = vmul.f32 %v109, %v282
    %v285 = vmul.f32 %v110, %v282
    %v286 = vadd.f32 %v278, %v283
    %v287 = vadd.f32 %v279, %v284
    %v288 = vadd.f32 %v280, %v285
    %s289 = sld [smem:[#allocation2 + $0x7]]
    %v290 = vstv %s289
    %v291 = vmul.f32 %v120, %v290
    %v292 = vmul.f32 %v121, %v290
    %v293 = vmul.f32 %v122, %v290
    %v294 = vadd.f32 %v286, %v291
    %v295 = vadd.f32 %v287, %v292
    %v296 = vadd.f32 %v288, %v293
    %v297 = vstv %s267
    %v298 = vadd.f32 %v294, %v297
    %v299 = vadd.f32 %v295, %v297
    %v300 = vadd.f32 %v296, %v297
    %v301 = vmax.f32 %v298, 0.0
    %v302 = vmax.f32 %v299, 0.0
    %v303 = vmax.f32 %v300, 0.0
    %v304 = vmul.f32 %v139, %v269
    %v305 = vmul.f32 %v140, %v269
    %v306 = vmul.f32 %v141, %v269
    %v307 = vmul.f32 %v146, %v274
    %v308 = vmul.f32 %v147, %v274
    %v309 = vmul.f32 %v148, %v274
    %v310 = vadd.f32 %v304, %v307
    %v311 = vadd.f32 %v305, %v308
    %v312 = vadd.f32 %v306, %v309
    %v313 = vmul.f32 %v156, %v282
    %v314 = vmul.f32 %v157, %v282
    %v315 = vmul.f32 %v158, %v282
    %v316 = vadd.f32 %v310, %v313
    %v317 = vadd.f32 %v311, %v314
    %v318 = vadd.f32 %v312, %v315
    %v319 = vmul.f32 %v166, %v290
    %v320 = vmul.f32 %v167, %v290
    %v321 = vmul.f32 %v168, %v290
    %v322 = vadd.f32 %v316, %v319
    %v323 = vadd.f32 %v317, %v320
    %v324 = vadd.f32 %v318, %v321
    %v325 = vadd.f32 %v322, %v297
    %v326 = vadd.f32 %v323, %v297
    %v327 = vadd.f32 %v324, %v297
    %v328 = vmax.f32 %v325, 0.0
    %v329 = vmax.f32 %v326, 0.0
    %v330 = vmax.f32 %v327, 0.0
    %v331 = vmul.f32 %v182, %v269
    %v332 = vmul.f32 %v183, %v269
    %v333 = vmul.f32 %v184, %v269
    %v334 = vmul.f32 %v189, %v274
    %v335 = vmul.f32 %v190, %v274
    %v336 = vmul.f32 %v191, %v274
    %v337 = vadd.f32 %v331, %v334
    %v338 = vadd.f32 %v332, %v335
    %v339 = vadd.f32 %v333, %v336
    %v340 = vmul.f32 %v199, %v282
    %v341 = vmul.f32 %v200, %v282
    %v342 = vmul.f32 %v201, %v282
    %v343 = vadd.f32 %v337, %v340
    %v344 = vadd.f32 %v338, %v341
    %v345 = vadd.f32 %v339, %v342
    %v346 = vmul.f32 %v209, %v290
    %v347 = vmul.f32 %v210, %v290
    %v348 = vmul.f32 %v211, %v290
    %v349 = vadd.f32 %v343, %v346
    %v350 = vadd.f32 %v344, %v347
    %v351 = vadd.f32 %v345, %v348
    %v352 = vadd.f32 %v349, %v297
    %v353 = vadd.f32 %v350, %v297
    %v354 = vadd.f32 %v351, %v297
    %v355 = vmax.f32 %v352, 0.0
    %v356 = vmax.f32 %v353, 0.0
    %v357 = vmax.f32 %v354, 0.0
    %v358 = vmul.f32 %v225, %v269
    %v359 = vmul.f32 %v226, %v269
    %v360 = vmul.f32 %v227, %v269
    %v361 = vmul.f32 %v232, %v274
    %v362 = vmul.f32 %v233, %v274
    %v363 = vmul.f32 %v234, %v274
    %v364 = vadd.f32 %v358, %v361
    %v365 = vadd.f32 %v359, %v362
    %v366 = vadd.f32 %v360, %v363
    %v367 = vmul.f32 %v242, %v282
    %v368 = vmul.f32 %v243, %v282
    %v369 = vmul.f32 %v244, %v282
    %v370 = vadd.f32 %v364, %v367
    %v371 = vadd.f32 %v365, %v368
    %v372 = vadd.f32 %v366, %v369
    %v373 = vmul.f32 %v252, %v290
    %v374 = vmul.f32 %v253, %v290
    %v375 = vmul.f32 %v254, %v290
    %v376 = vadd.f32 %v370, %v373
    %v377 = vadd.f32 %v371, %v374
    %v378 = vadd.f32 %v372, %v375
    %v379 = vadd.f32 %v376, %v297
    %v380 = vadd.f32 %v377, %v297
    %v381 = vadd.f32 %v378, %v297
    %v382 = vmax.f32 %v379, 0.0
    %v383 = vmax.f32 %v380, 0.0
    %v384 = vmax.f32 %v381, 0.0
    %s385 = sld [smem:[#allocation7]]
    %v386 = vstv %s385
    %v387 = vmul.f32 %v135, %v386
    %v388 = vmul.f32 %v136, %v386
    %v389 = vmul.f32 %v137, %v386
    %s390 = sld [smem:[#allocation7 + $0x1]]
    %v391 = vstv %s390
    %v392 = vmul.f32 %v178, %v391
    %v393 = vmul.f32 %v179, %v391
    %v394 = vmul.f32 %v180, %v391
    %v395 = vadd.f32 %v387, %v392
    %v396 = vadd.f32 %v388, %v393
    %v397 = vadd.f32 %v389, %v394
    %s398 = sld [smem:[#allocation7 + $0x2]]
    %v399 = vstv %s398
    %v400 = vmul.f32 %v221, %v399
    %v401 = vmul.f32 %v222, %v399
    %v402 = vmul.f32 %v223, %v399
    %v403 = vadd.f32 %v395, %v400
    %v404 = vadd.f32 %v396, %v401
    %v405 = vadd.f32 %v397, %v402
    %s406 = sld [smem:[#allocation7 + $0x3]]
    %v407 = vstv %s406
    %v408 = vmul.f32 %v264, %v407
    %v409 = vmul.f32 %v265, %v407
    %v410 = vmul.f32 %v266, %v407
    %v411 = vadd.f32 %v403, %v408
    %v412 = vadd.f32 %v404, %v409
    %v413 = vadd.f32 %v405, %v410
    %s414 = sld [smem:[#allocation7 + $0x4]]
    %v415 = vstv %s414
    %v416 = vmul.f32 %v301, %v415
    %v417 = vmul.f32 %v302, %v415
    %v418 = vmul.f32 %v303, %v415
    %v419 = vadd.f32 %v411, %v416
    %v420 = vadd.f32 %v412, %v417
    %v421 = vadd.f32 %v413, %v418
    %s422 = sld [smem:[#allocation7 + $0x5]]
    %v423 = vstv %s422
    %v424 = vmul.f32 %v328, %v423
    %v425 = vmul.f32 %v329, %v423
    %v426 = vmul.f32 %v330, %v423
    %v427 = vadd.f32 %v419, %v424
    %v428 = vadd.f32 %v420, %v425
    %v429 = vadd.f32 %v421, %v426
    %s430 = sld [smem:[#allocation7 + $0x6]]
    %v431 = vstv %s430
    %v432 = vmul.f32 %v355, %v431
    %v433 = vmul.f32 %v356, %v431
    %v434 = vmul.f32 %v357, %v431
    %v435 = vadd.f32 %v427, %v432
    %v436 = vadd.f32 %v428, %v433
    %v437 = vadd.f32 %v429, %v434
    %s438 = sld [smem:[#allocation7 + $0x7]]
    %v439 = vstv %s438
    %v440 = vmul.f32 %v382, %v439
    %v441 = vmul.f32 %v383, %v439
    %v442 = vmul.f32 %v384, %v439
    %v443 = vadd.f32 %v435, %v440
    %v444 = vadd.f32 %v436, %v441
    %v445 = vadd.f32 %v437, %v442
    %s446 = sld [smem:[#allocation8]]
    %v447 = vstv %s446
    %v448 = vadd.f32 %v443, %v447
    %v449 = vadd.f32 %v444, %v447
    %v450 = vadd.f32 %v445, %v447
    %v451 = vmax.f32 %v448, 0.0
    %v452 = vmax.f32 %v449, 0.0
    %v453 = vmax.f32 %v450, 0.0
    %s454 = sld [smem:[#allocation7 + $0x8]]
    %v455 = vstv %s454
    %v456 = vmul.f32 %v135, %v455
    %v457 = vmul.f32 %v136, %v455
    %v458 = vmul.f32 %v137, %v455
    %s459 = sld [smem:[#allocation7 + $0x9]]
    %v460 = vstv %s459
    %v461 = vmul.f32 %v178, %v460
    %v462 = vmul.f32 %v179, %v460
    %v463 = vmul.f32 %v180, %v460
    %v464 = vadd.f32 %v456, %v461
    %v465 = vadd.f32 %v457, %v462
    %v466 = vadd.f32 %v458, %v463
    %s467 = sld [smem:[#allocation7 + $0xa]]
    %v468 = vstv %s467
    %v469 = vmul.f32 %v221, %v468
    %v470 = vmul.f32 %v222, %v468
    %v471 = vmul.f32 %v223, %v468
    %v472 = vadd.f32 %v464, %v469
    %v473 = vadd.f32 %v465, %v470
    %v474 = vadd.f32 %v466, %v471
    %s475 = sld [smem:[#allocation7 + $0xb]]
    %v476 = vstv %s475
    %v477 = vmul.f32 %v264, %v476
    %v478 = vmul.f32 %v265, %v476
    %v479 = vmul.f32 %v266, %v476
    %v480 = vadd.f32 %v472, %v477
    %v481 = vadd.f32 %v473, %v478
    %v482 = vadd.f32 %v474, %v479
    %s483 = sld [smem:[#allocation7 + $0xc]]
    %v484 = vstv %s483
    %v485 = vmul.f32 %v301, %v484
    %v486 = vmul.f32 %v302, %v484
    %v487 = vmul.f32 %v303, %v484
    %v488 = vadd.f32 %v480, %v485
    %v489 = vadd.f32 %v481, %v486
    %v490 = vadd.f32 %v482, %v487
    %s491 = sld [smem:[#allocation7 + $0xd]]
    %v492 = vstv %s491
    %v493 = vmul.f32 %v328, %v492
    %v494 = vmul.f32 %v329, %v492
    %v495 = vmul.f32 %v330, %v492
    %v496 = vadd.f32 %v488, %v493
    %v497 = vadd.f32 %v489, %v494
    %v498 = vadd.f32 %v490, %v495
    %s499 = sld [smem:[#allocation7 + $0xe]]
    %v500 = vstv %s499
    %v501 = vmul.f32 %v355, %v500
    %v502 = vmul.f32 %v356, %v500
    %v503 = vmul.f32 %v357, %v500
    %v504 = vadd.f32 %v496, %v501
    %v505 = vadd.f32 %v497, %v502
    %v506 = vadd.f32 %v498, %v503
    %s507 = sld [smem:[#allocation7 + $0xf]]
    %v508 = vstv %s507
    %v509 = vmul.f32 %v382, %v508
    %v510 = vmul.f32 %v383, %v508
    %v511 = vmul.f32 %v384, %v508
    %v512 = vadd.f32 %v504, %v509
    %v513 = vadd.f32 %v505, %v510
    %v514 = vadd.f32 %v506, %v511
    %s515 = sld [smem:[#allocation8 + $0x1]]
    %v516 = vstv %s515
    %v517 = vadd.f32 %v512, %v516
    %v518 = vadd.f32 %v513, %v516
    %v519 = vadd.f32 %v514, %v516
    %v520 = vmax.f32 %v517, 0.0
    %v521 = vmax.f32 %v518, 0.0
    %v522 = vmax.f32 %v519, 0.0
    %v523 = vlaneseq
    %v524 = vand.u32 %v523, 127
    %v525 = vld [vmem:[%s6] sm:$0xff]
    %v526 = vld [vmem:[%s6 + $0x8] sm:$0xff]
    %v527 = vld [vmem:[%s6 + $0x10] sm:$0x1f]
    %v528 = vmul.f32 %v451, %v525
    %v529 = vmul.f32 %v452, %v526
    %v530 = vmul.f32 %v453, %v527
    %s531 = scalar_lea.vmem %s6, 144
    %v532 = vld [vmem:[%s531] sm:$0xff]
    %v533 = vld [vmem:[%s531 + $0x8] sm:$0xff]
    %v534 = vld [vmem:[%s531 + $0x10] sm:$0x1f]
    %v535 = vmul.f32 %v520, %v532
    %v536 = vmul.f32 %v521, %v533
    %v537 = vmul.f32 %v522, %v534
    %v538 = vadd.f32 %v528, %v535
    %v539 = vadd.f32 %v529, %v536
    %v540 = vadd.f32 %v530, %v537
    %vm541 = vcmask 171008
    %v542 = vsel %vm541, %v538, 0.0
    %v543 = vsel %vm541, %v539, 0.0
    %v544 = vadd.f32 %v542, %v543
    %vm545 = vcmask 167936
    %v546 = vsel %vm545, %v540, 0.0
    %v547 = vadd.f32 %v544, %v546
    %548 = vadd.xlane.f32.xlu0 %v547
    %v549 = vpop.xlane.xlu0 %548
    %v550 = vrot.slane %v549, 4
    %v551 = vadd.f32 %v549, %v550
    %v552 = vrot.slane %v551, 2
    %v553 = vadd.f32 %v551, %v552
    %v554 = vrot.slane %v553, 1
    %v555 = vadd.f32 %v553, %v554
    %s556 = vtos %v555
    %v557 = vstv %s556
    %s558 = sld [smem:[#allocation10]]
    %v559 = vstv %s558
    %v560 = vadd.f32 %v557, %v559
    %vm561 = vcmp.eq.s32.totalorder %v524, 0
    %v562 = vsel %vm561, %v560, 0.0
    %v563 = vadd.f32 %v562, 0.0
    %s564 = scalar_lea.vmem %s6, 24
    %v565 = vld [vmem:[%s564] sm:$0xff]
    %v566 = vld [vmem:[%s564 + $0x8] sm:$0xff]
    %v567 = vld [vmem:[%s564 + $0x10] sm:$0x1f]
    %v568 = vmul.f32 %v451, %v565
    %v569 = vmul.f32 %v452, %v566
    %v570 = vmul.f32 %v453, %v567
    %s571 = scalar_lea.vmem %s6, 168
    %v572 = vld [vmem:[%s571] sm:$0xff]
    %v573 = vld [vmem:[%s571 + $0x8] sm:$0xff]
    %v574 = vld [vmem:[%s571 + $0x10] sm:$0x1f]
    %v575 = vmul.f32 %v520, %v572
    %v576 = vmul.f32 %v521, %v573
    %v577 = vmul.f32 %v522, %v574
    %v578 = vadd.f32 %v568, %v575
    %v579 = vadd.f32 %v569, %v576
    %v580 = vadd.f32 %v570, %v577
    %v581 = vsel %vm541, %v578, 0.0
    %v582 = vsel %vm541, %v579, 0.0
    %v583 = vadd.f32 %v581, %v582
    %v584 = vsel %vm545, %v580, 0.0
    %v585 = vadd.f32 %v583, %v584
    %586 = vadd.xlane.f32.xlu0 %v585
    %v587 = vpop.xlane.xlu0 %586
    %v588 = vrot.slane %v587, 4
    %v589 = vadd.f32 %v587, %v588
    %v590 = vrot.slane %v589, 2
    %v591 = vadd.f32 %v589, %v590
    %v592 = vrot.slane %v591, 1
    %v593 = vadd.f32 %v591, %v592
    %s594 = vtos %v593
    %v595 = vstv %s594
    %s596 = sld [smem:[#allocation10 + $0x1]]
    %v597 = vstv %s596
    %v598 = vadd.f32 %v595, %v597
    %vm599 = vcmp.eq.s32.totalorder %v524, 1
    %v600 = vsel %vm599, %v598, 0.0
    %v601 = vadd.f32 %v563, %v600
    %s602 = scalar_lea.vmem %s6, 48
    %v603 = vld [vmem:[%s602] sm:$0xff]
    %v604 = vld [vmem:[%s602 + $0x8] sm:$0xff]
    %v605 = vld [vmem:[%s602 + $0x10] sm:$0x1f]
    %v606 = vmul.f32 %v451, %v603
    %v607 = vmul.f32 %v452, %v604
    %v608 = vmul.f32 %v453, %v605
    %s609 = scalar_lea.vmem %s6, 192
    %v610 = vld [vmem:[%s609] sm:$0xff]
    %v611 = vld [vmem:[%s609 + $0x8] sm:$0xff]
    %v612 = vld [vmem:[%s609 + $0x10] sm:$0x1f]
    %v613 = vmul.f32 %v520, %v610
    %v614 = vmul.f32 %v521, %v611
    %v615 = vmul.f32 %v522, %v612
    %v616 = vadd.f32 %v606, %v613
    %v617 = vadd.f32 %v607, %v614
    %v618 = vadd.f32 %v608, %v615
    %v619 = vsel %vm541, %v616, 0.0
    %v620 = vsel %vm541, %v617, 0.0
    %v621 = vadd.f32 %v619, %v620
    %v622 = vsel %vm545, %v618, 0.0
    %v623 = vadd.f32 %v621, %v622
    %624 = vadd.xlane.f32.xlu0 %v623
    %v625 = vpop.xlane.xlu0 %624
    %v626 = vrot.slane %v625, 4
    %v627 = vadd.f32 %v625, %v626
    %v628 = vrot.slane %v627, 2
    %v629 = vadd.f32 %v627, %v628
    %v630 = vrot.slane %v629, 1
    %v631 = vadd.f32 %v629, %v630
    %s632 = vtos %v631
    %v633 = vstv %s632
    %s634 = sld [smem:[#allocation10 + $0x2]]
    %v635 = vstv %s634
    %v636 = vadd.f32 %v633, %v635
    %vm637 = vcmp.eq.s32.totalorder %v524, 2
    %v638 = vsel %vm637, %v636, 0.0
    %v639 = vadd.f32 %v601, %v638
    %s640 = scalar_lea.vmem %s6, 72
    %v641 = vld [vmem:[%s640] sm:$0xff]
    %v642 = vld [vmem:[%s640 + $0x8] sm:$0xff]
    %v643 = vld [vmem:[%s640 + $0x10] sm:$0x1f]
    %v644 = vmul.f32 %v451, %v641
    %v645 = vmul.f32 %v452, %v642
    %v646 = vmul.f32 %v453, %v643
    %s647 = scalar_lea.vmem %s6, 216
    %v648 = vld [vmem:[%s647] sm:$0xff]
    %v649 = vld [vmem:[%s647 + $0x8] sm:$0xff]
    %v650 = vld [vmem:[%s647 + $0x10] sm:$0x1f]
    %v651 = vmul.f32 %v520, %v648
    %v652 = vmul.f32 %v521, %v649
    %v653 = vmul.f32 %v522, %v650
    %v654 = vadd.f32 %v644, %v651
    %v655 = vadd.f32 %v645, %v652
    %v656 = vadd.f32 %v646, %v653
    %v657 = vsel %vm541, %v654, 0.0
    %v658 = vsel %vm541, %v655, 0.0
    %v659 = vadd.f32 %v657, %v658
    %v660 = vsel %vm545, %v656, 0.0
    %v661 = vadd.f32 %v659, %v660
    %662 = vadd.xlane.f32.xlu0 %v661
    %v663 = vpop.xlane.xlu0 %662
    %v664 = vrot.slane %v663, 4
    %v665 = vadd.f32 %v663, %v664
    %v666 = vrot.slane %v665, 2
    %v667 = vadd.f32 %v665, %v666
    %v668 = vrot.slane %v667, 1
    %v669 = vadd.f32 %v667, %v668
    %s670 = vtos %v669
    %v671 = vstv %s670
    %s672 = sld [smem:[#allocation10 + $0x3]]
    %v673 = vstv %s672
    %v674 = vadd.f32 %v671, %v673
    %vm675 = vcmp.eq.s32.totalorder %v524, 3
    %v676 = vsel %vm675, %v674, 0.0
    %v677 = vadd.f32 %v639, %v676
    %s678 = scalar_lea.vmem %s6, 96
    %v679 = vld [vmem:[%s678] sm:$0xff]
    %v680 = vld [vmem:[%s678 + $0x8] sm:$0xff]
    %v681 = vld [vmem:[%s678 + $0x10] sm:$0x1f]
    %v682 = vmul.f32 %v451, %v679
    %v683 = vmul.f32 %v452, %v680
    %v684 = vmul.f32 %v453, %v681
    %s685 = scalar_lea.vmem %s6, 240
    %v686 = vld [vmem:[%s685] sm:$0xff]
    %v687 = vld [vmem:[%s685 + $0x8] sm:$0xff]
    %v688 = vld [vmem:[%s685 + $0x10] sm:$0x1f]
    %v689 = vmul.f32 %v520, %v686
    %v690 = vmul.f32 %v521, %v687
    %v691 = vmul.f32 %v522, %v688
    %v692 = vadd.f32 %v682, %v689
    %v693 = vadd.f32 %v683, %v690
    %v694 = vadd.f32 %v684, %v691
    %v695 = vsel %vm541, %v692, 0.0
    %v696 = vsel %vm541, %v693, 0.0
    %v697 = vadd.f32 %v695, %v696
    %v698 = vsel %vm545, %v694, 0.0
    %v699 = vadd.f32 %v697, %v698
    %700 = vadd.xlane.f32.xlu0 %v699
    %v701 = vpop.xlane.xlu0 %700
    %v702 = vrot.slane %v701, 4
    %v703 = vadd.f32 %v701, %v702
    %v704 = vrot.slane %v703, 2
    %v705 = vadd.f32 %v703, %v704
    %v706 = vrot.slane %v705, 1
    %v707 = vadd.f32 %v705, %v706
    %s708 = vtos %v707
    %v709 = vstv %s708
    %s710 = sld [smem:[#allocation10 + $0x4]]
    %v711 = vstv %s710
    %v712 = vadd.f32 %v709, %v711
    %vm713 = vcmp.eq.s32.totalorder %v524, 4
    %v714 = vsel %vm713, %v712, 0.0
    %v715 = vadd.f32 %v677, %v714
    %s716 = scalar_lea.vmem %s6, 120
    %v717 = vld [vmem:[%s716] sm:$0xff]
    %v718 = vld [vmem:[%s716 + $0x8] sm:$0xff]
    %v719 = vld [vmem:[%s716 + $0x10] sm:$0x1f]
    %v720 = vmul.f32 %v451, %v717
    %v721 = vmul.f32 %v452, %v718
    %v722 = vmul.f32 %v453, %v719
    %s723 = scalar_lea.vmem %s6, 264
    %v724 = vld [vmem:[%s723] sm:$0xff]
    %v725 = vld [vmem:[%s723 + $0x8] sm:$0xff]
    %v726 = vld [vmem:[%s723 + $0x10] sm:$0x1f]
    %v727 = vmul.f32 %v520, %v724
    %v728 = vmul.f32 %v521, %v725
    %v729 = vmul.f32 %v522, %v726
    %v730 = vadd.f32 %v720, %v727
    %v731 = vadd.f32 %v721, %v728
    %v732 = vadd.f32 %v722, %v729
    %v733 = vsel %vm541, %v730, 0.0
    %v734 = vsel %vm541, %v731, 0.0
    %v735 = vadd.f32 %v733, %v734
    %v736 = vsel %vm545, %v732, 0.0
    %v737 = vadd.f32 %v735, %v736
    %738 = vadd.xlane.f32.xlu0 %v737
    %v739 = vpop.xlane.xlu0 %738
    %v740 = vrot.slane %v739, 4
    %v741 = vadd.f32 %v739, %v740
    %v742 = vrot.slane %v741, 2
    %v743 = vadd.f32 %v741, %v742
    %v744 = vrot.slane %v743, 1
    %v745 = vadd.f32 %v743, %v744
    %s746 = vtos %v745
    %v747 = vstv %s746
    %s748 = sld [smem:[#allocation10 + $0x5]]
    %v749 = vstv %s748
    %v750 = vadd.f32 %v747, %v749
    %vm751 = vcmp.eq.s32.totalorder %v524, 5
    %v752 = vsel %vm751, %v750, 0.0
    %v753 = vadd.f32 %v715, %v752
    %vm754 = vcmask 48128
    %v755 = vsel %vm754, %v753, -inf
    %756 = vmax.xlane.f32.xlu0 %v755
    %v757 = vpop.xlane.xlu0 %756
    %v758 = vsub.f32 %v753, %v757
    %v759 = vmul.f32 %v758, 1.442695
    %v760 = vpow.pop %v759
    %v761 = vsel %vm754, %v760, 0.0
    %762 = vadd.xlane.f32.xlu0 %v761
    %v763 = vpop.xlane.xlu0 %762
    %v764 = vrcp.pop %v763
    %v765 = vmul.f32 %v760, %v764
    %vm766 = vcmask 40960
    %767 = vst.msk [vmem:[#allocation11] sm:$0x1] %vm766, %v765
    // Predicated region
    $region50: #{policy_forward.1} parent=1 // pred_check
      _
    $region51: #{policy_forward.1} parent=1 // pred_check_branch
      %769 = sbr.rel (0) target = $region53
    $region52: #{policy_forward.1} parent=1 // pred_region
      %771 = vsyncadd [#allocation3], 0
      %s773 = sshll.u32 [#allocation11], 4
      %s774 = int_to_ptr.vmem [resolvable:$true] %s773
      %s775 = sshll.u32 %s7, 4
      %s776 = int_to_ptr.hbm [resolvable:$true] %s775
      %778 = dma.vmem_to_hbm [thread:$0]  %s774, 16, %s776, [#allocation3]
    $region53: #{policy_forward.1} parent=1 // pred_fallthru
      _
    // Predicated region
    $region54: #{policy_forward.1} parent=1 // pred_check
      _
    $region55: #{policy_forward.1} parent=1 // pred_check_branch
      %780 = sbr.rel (0) target = $region57
    $region56: #{policy_forward.1} parent=1 // pred_region
      %782 = dma.done [#allocation3], 16
    $region57: #{policy_forward.1} parent=1 // pred_fallthru
      _
    %783 = vsyncpa [#allocation3], 1
    %784 = vsyncpa [#allocation4], 1
    %785 = vsyncpa [#allocation6], 1
    %786 = vsyncpa [#allocation9], 1

</llo_original>
